<compile_context>
chip_gen: v7x
topology: tpu7x:2x2x1
jax: 0.10.0
libtpu: 0.0.40
codegen_flags: <defaults>
</compile_context>

<pallas_src>
import jax
import jax.numpy as jnp
from jax.experimental import pallas as pl
from jax.experimental.pallas import tpu as pltpu

# ----- small synthetic BERT config (bert-base scaled down) -----
VOCAB = 103         # vocab (incl. the added '[eos]' special token)
VOCAB_PAD = 128     # embedding table padded to 128 rows (lane/matmul friendly)
B = 2               # batch
S = 8               # sequence length
H = 32              # hidden size
NH = 2              # attention heads
DH = H // NH        # head dim
I = 64              # intermediate (FFN) size
L = 2               # number of encoder layers
LN_EPS = 1e-12
ATT_SCALE = 1.0 / float(DH) ** 0.5

# ----- packed-slab row offsets (all static Python ints) -----
# w32 slab (bf16, lane width 32):  wemb | wo_0 | wo_1 | w2_0 | w2_1 | wp
W32_WEMB = 0                       # rows [0, 128)
W32_WO = VOCAB_PAD                 # rows [128, 128 + L*H)
W32_W2 = VOCAB_PAD + L * H         # rows [192, 192 + L*I)
W32_WP = VOCAB_PAD + L * H + L * I # rows [320, 352)
# bias/LN slab (f32, lane width 128)
R_EMB_G, R_EMB_B = 0, 1
R_LAYER_BASE = 2                   # 8 rows per layer: bqkv,bo,ln1_g,ln1_b,b1,b2,ln2_g,ln2_b
R_BP = R_LAYER_BASE + L * 8        # 18
R_WC = R_BP + 1                    # 19 (classifier weight stored as a row)
R_BC = R_BP + 2                    # 20
PSLAB_ROWS = 24                    # padded to a sublane multiple


# ---------------------------------------------------------------------------
# Fused forward kernel
# ---------------------------------------------------------------------------
def _layernorm(x, g, b):
    mean = jnp.mean(x, axis=-1, keepdims=True)
    var = jnp.mean(jnp.square(x - mean), axis=-1, keepdims=True)
    return (x - mean) * jax.lax.rsqrt(var + LN_EPS) * g + b


def _gelu(x):
    # tanh-approximate GELU (BERT uses erf-GELU; difference is negligible)
    return 0.5 * x * (1.0 + jnp.tanh(0.7978845608028654 * (x + 0.044715 * x * x * x)))


def _bert_forward_kernel(onehot_ref, addemb_ref, abias_ref,
                         w32_ref, w96_ref, w64_ref, pslab_ref, o_ref):
    f32 = jnp.float32
    bf16 = jnp.bfloat16

    def prow(r, width):
        # one bias/LN row of the f32 param slab (static slice)
        return pslab_ref[r:r + 1, 0:width]

    # ----- embeddings: one-hot gather matmul + precomputed (pos+type) add -----
    word = jnp.dot(onehot_ref[...], w32_ref[W32_WEMB:W32_WEMB + VOCAB_PAD, :],
                   preferred_element_type=f32)                       # (B*S, H)
    x = _layernorm(word + addemb_ref[...], prow(R_EMB_G, H), prow(R_EMB_B, H))

    abias = abias_ref[...]                                           # (B*S, B*S)

    # ----- encoder layers (fully unrolled; nothing leaves VMEM) -----
    for l in range(L):
        base = R_LAYER_BASE + l * 8
        xb = x.astype(bf16)

        # fused QKV for all heads: one (B*S,H)x(H,3H) matmul
        qkv = jnp.dot(xb, w96_ref[l * H:(l + 1) * H, :],
                      preferred_element_type=f32) + prow(base + 0, 3 * H)

        ctx = []
        for h in range(NH):
            q = qkv[:, h * DH:(h + 1) * DH]
            k = qkv[:, H + h * DH:H + (h + 1) * DH]
            v = qkv[:, 2 * H + h * DH:2 * H + (h + 1) * DH]
            # both batch rows in one (B*S,B*S) score matmul; cross-batch +
            # padding masking is in the precomputed additive bias
            scores = jax.lax.dot_general(
                q.astype(bf16), k.astype(bf16), (((1,), (1,)), ((), ())),
                preferred_element_type=f32) * ATT_SCALE + abias
            scores = scores - jnp.max(scores, axis=-1, keepdims=True)
            p = jnp.exp(scores)
            p = p * pl.reciprocal(jnp.sum(p, axis=-1, keepdims=True), approx=True)
            ctx.append(jnp.dot(p.astype(bf16), v.astype(bf16),
                               preferred_element_type=f32))          # (B*S, DH)

        # fused output projection: heads contiguous on lanes, one (H,H) matmul
        ctx_all = jnp.concatenate(ctx, axis=-1)                      # (B*S, H)
        attn_out = jnp.dot(ctx_all.astype(bf16),
                           w32_ref[W32_WO + l * H:W32_WO + (l + 1) * H, :],
                           preferred_element_type=f32) + prow(base + 1, H)
        x = _layernorm(attn_out + x, prow(base + 2, H), prow(base + 3, H))

        # FFN
        ff = _gelu(jnp.dot(x.astype(bf16), w64_ref[l * H:(l + 1) * H, :],
                           preferred_element_type=f32) + prow(base + 4, I))
        ff = jnp.dot(ff.astype(bf16),
                     w32_ref[W32_W2 + l * I:W32_W2 + (l + 1) * I, :],
                     preferred_element_type=f32) + prow(base + 5, H)
        x = _layernorm(ff + x, prow(base + 6, H), prow(base + 7, H))

    # ----- pooler ([CLS]) -> classifier (H -> 1) -> sigmoid -----
    cls = jnp.concatenate([x[b * S:b * S + 1, :] for b in range(B)], axis=0)  # (B, H)
    pooled = jnp.tanh(jnp.dot(cls.astype(bf16),
                              w32_ref[W32_WP:W32_WP + H, :],
                              preferred_element_type=f32) + prow(R_BP, H))
    logits = (jnp.sum(pooled * prow(R_WC, H), axis=-1, keepdims=True)
              + pslab_ref[R_BC:R_BC + 1, 0:1])                                # (B, 1)
    o_ref[...] = jax.nn.sigmoid(logits).astype(o_ref.dtype)


def _vmem_spec(x):
    nd = x.ndim
    return pl.BlockSpec(x.shape, lambda i, _nd=nd: (0,) * _nd)


# ---------------------------------------------------------------------------
# Parameters (deterministic synthetic init — no checkpoint loading).
# Weights are packed into 3 bf16 matrix slabs (grouped by lane width) and one
# f32 bias/LayerNorm slab so the kernel takes only a handful of refs.
# ---------------------------------------------------------------------------
def init_params(key):
    def nrm(k, shape, scale=0.02):
        return scale * jax.random.normal(k, shape, dtype=jnp.float32)

    ks = iter(jax.random.split(key, 16))
    wemb = jnp.zeros((VOCAB_PAD, H), jnp.float32).at[:VOCAB].set(nrm(next(ks), (VOCAB, H)))
    pemb = nrm(next(ks), (S, H))
    temb = nrm(next(ks), (2, H))

    # per-layer matrices; wqkv columns = [Q all heads | K all heads | V all heads]
    wqkv = [nrm(next(ks), (H, 3 * H)) for _ in range(L)]
    wo = [nrm(next(ks), (H, H)) for _ in range(L)]     # rows = per-head (DH,H) blocks stacked
    w1 = [nrm(next(ks), (H, I)) for _ in range(L)]
    w2 = [nrm(next(ks), (I, H)) for _ in range(L)]
    wp = nrm(next(ks), (H, H))
    wc = nrm(next(ks), (H,))

    w32 = jnp.concatenate([wemb] + wo + w2 + [wp], axis=0).astype(jnp.bfloat16)  # (352, 32)
    w96 = jnp.concatenate(wqkv, axis=0).astype(jnp.bfloat16)                     # (64, 96)
    w64 = jnp.concatenate(w1, axis=0).astype(jnp.bfloat16)                       # (64, 64)

    def row(vec, width):
        r = jnp.zeros((1, 128), jnp.float32)
        return r.at[0, :width].set(jnp.asarray(vec, jnp.float32).reshape(-1))

    rows = [row(jnp.ones((H,)), H),            # emb LN gamma
            row(jnp.zeros((H,)), H)]           # emb LN beta
    for _ in range(L):
        rows += [row(jnp.zeros((3 * H,)), 3 * H),  # bqkv
                 row(jnp.zeros((H,)), H),          # bo
                 row(jnp.ones((H,)), H),           # ln1 gamma
                 row(jnp.zeros((H,)), H),          # ln1 beta
                 row(jnp.zeros((I,)), I),          # b1
                 row(jnp.zeros((H,)), H),          # b2
                 row(jnp.ones((H,)), H),           # ln2 gamma
                 row(jnp.zeros((H,)), H)]          # ln2 beta
    rows += [row(jnp.zeros((H,)), H),              # pooler bias
             row(wc, H),                           # classifier weight (as a row)
             row(jnp.zeros((1,)), 1)]              # classifier bias
    while len(rows) < PSLAB_ROWS:
        rows.append(jnp.zeros((1, 128), jnp.float32))
    pslab = jnp.concatenate(rows, axis=0)          # (24, 128) f32

    return {"w32": w32, "w96": w96, "w64": w64, "pslab": pslab,
            "pemb": pemb, "temb": temb}


# ---------------------------------------------------------------------------
# Forward pass (equivalent of sigmoid(bert_model(ids, mask, seg)[0]).squeeze())
# ---------------------------------------------------------------------------
def neural_network_forward(params, input_ids, input_mask, token_type_ids):
    ids = input_ids.reshape(B * S).astype(jnp.int32)
    seg = token_type_ids.reshape(B * S).astype(jnp.int32)
    maskf = input_mask.reshape(B * S).astype(jnp.float32)

    # one-hot token ids over the padded vocab (bf16 MXU operand)
    onehot = (jax.lax.broadcasted_iota(jnp.int32, (B * S, VOCAB_PAD), 1)
              == ids[:, None]).astype(jnp.bfloat16)

    # position (tiled over batch) + token-type embeddings, pre-added (XLA side)
    add_emb = (jnp.tile(params["pemb"], (B, 1)) + params["temb"][seg]).astype(jnp.float32)

    # additive attention bias: -1e4 on cross-batch blocks and padded key positions
    batch_idx = jnp.arange(B * S) // S
    same_batch = batch_idx[:, None] == batch_idx[None, :]
    key_valid = maskf[None, :] > 0.5
    attn_bias = jnp.where(same_batch & key_valid, 0.0, -10000.0).astype(jnp.float32)

    args = (onehot, add_emb, attn_bias,
            params["w32"], params["w96"], params["w64"], params["pslab"])

    probs = pl.pallas_call(
        _bert_forward_kernel,
        out_shape=jax.ShapeDtypeStruct((B, 1), jnp.float32),
        grid=(1,),
        in_specs=[_vmem_spec(a) for a in args],
        out_specs=pl.BlockSpec((B, 1), lambda i: (0, 0)),
        compiler_params=pltpu.CompilerParams(dimension_semantics=("arbitrary",)),
    )(*args)
    return probs[:, 0]   # (B,) like logits.squeeze()


# TODO(synk): training-loop machinery (AdamW, BCELoss, grad clipping, metrics,
# tokenization/dataloading, checkpoint loading) has no Pallas equivalent and
# is out of scope.

if __name__ == "__main__":
    key = jax.random.PRNGKey(0)
    kp, kids, kseg = jax.random.split(key, 3)
    params = init_params(kp)

    input_ids = jax.random.randint(kids, (B, S), 0, VOCAB, dtype=jnp.int32)
    # simple attention mask: last token of example 1 is padding
    input_mask = jnp.ones((B, S), jnp.int32).at[1, S - 1].set(0)
    token_type_ids = jnp.concatenate(
        [jnp.zeros((B, S // 2), jnp.int32), jnp.ones((B, S // 2), jnp.int32)], axis=1)

    forward = jax.jit(neural_network_forward)
    out = forward(params, input_ids, input_mask, token_type_ids)
    out = jax.block_until_ready(out)
    assert out.shape == (B,)
    assert bool(jnp.all((out >= 0.0) & (out <= 1.0)))
    print("KERNEL_OK")
</pallas_src>

<mosaic_0001>
module attributes {stable_mosaic.version = 11 : i64} {
  func.func @_bert_forward_kernel(%arg0: i32, %arg1: memref<16x128xbf16, #tpu.memory_space<vmem>>, %arg2: memref<16x32xf32, #tpu.memory_space<vmem>>, %arg3: memref<16x16xf32, #tpu.memory_space<vmem>>, %arg4: memref<352x32xbf16, #tpu.memory_space<vmem>>, %arg5: memref<64x96xbf16, #tpu.memory_space<vmem>>, %arg6: memref<64x64xbf16, #tpu.memory_space<vmem>>, %arg7: memref<24x128xf32, #tpu.memory_space<vmem>>, %arg8: memref<2x1xf32, #tpu.memory_space<vmem>>) attributes {dimension_semantics = [#tpu.dimension_semantics<arbitrary>], iteration_bounds = array<i64: 1>, scalar_prefetch = 0 : i64, scratch_operands = 0 : i64, tpu.core_type = #tpu.core_type<tc>, window_params = [{pipeline_mode = #tpu.pipeline_mode<synchronous>, transform_indices = @transform_0, window_bounds = array<i64: 16, 128>}, {pipeline_mode = #tpu.pipeline_mode<synchronous>, transform_indices = @transform_1, window_bounds = array<i64: 16, 32>}, {pipeline_mode = #tpu.pipeline_mode<synchronous>, transform_indices = @transform_2, window_bounds = array<i64: 16, 16>}, {pipeline_mode = #tpu.pipeline_mode<synchronous>, transform_indices = @transform_3, window_bounds = array<i64: 352, 32>}, {pipeline_mode = #tpu.pipeline_mode<synchronous>, transform_indices = @transform_4, window_bounds = array<i64: 64, 96>}, {pipeline_mode = #tpu.pipeline_mode<synchronous>, transform_indices = @transform_5, window_bounds = array<i64: 64, 64>}, {pipeline_mode = #tpu.pipeline_mode<synchronous>, transform_indices = @transform_6, window_bounds = array<i64: 24, 128>}, {pipeline_mode = #tpu.pipeline_mode<synchronous>, transform_indices = @transform_7, window_bounds = array<i64: 2, 1>}]} {
    %c0 = arith.constant 0 : index
    %c0_0 = arith.constant 0 : index
    %0 = vector.load %arg1[%c0, %c0_0] : memref<16x128xbf16, #tpu.memory_space<vmem>>, vector<16x128xbf16>
    %c0_1 = arith.constant 0 : index
    %c0_2 = arith.constant 0 : index
    %1 = vector.load %arg4[%c0_1, %c0_2] : memref<352x32xbf16, #tpu.memory_space<vmem>>, vector<128x32xbf16>
    %cst = arith.constant dense<0.000000e+00> : vector<16x32xf32>
    %2 = tpu.matmul %0, %1, %cst {dimension_numbers = #tpu.dot_dimension_numbers<[1], [0], [0], [1], [0, 0, 1, 1], [], []>} : vector<16x128xbf16>, vector<128x32xbf16>, vector<16x32xf32> -> vector<16x32xf32>
    %c0_3 = arith.constant 0 : index
    %c0_4 = arith.constant 0 : index
    %3 = vector.load %arg2[%c0_3, %c0_4] : memref<16x32xf32, #tpu.memory_space<vmem>>, vector<16x32xf32>
    %4 = arith.addf %2, %3 : vector<16x32xf32>
    %c0_5 = arith.constant 0 : index
    %c0_6 = arith.constant 0 : index
    %5 = vector.load %arg7[%c0_5, %c0_6] : memref<24x128xf32, #tpu.memory_space<vmem>>, vector<1x32xf32>
    %c1 = arith.constant 1 : index
    %c0_7 = arith.constant 0 : index
    %6 = vector.load %arg7[%c1, %c0_7] : memref<24x128xf32, #tpu.memory_space<vmem>>, vector<1x32xf32>
    %cst_8 = arith.constant dense<0.000000e+00> : vector<16xf32>
    %7 = vector.multi_reduction <add>, %4, %cst_8 [1] : vector<16x32xf32> to vector<16xf32>
    %8 = vector.shape_cast %7 : vector<16xf32> to vector<16x1xf32>
    %cst_9 = arith.constant 3.200000e+01 : f32
    %9 = vector.broadcast %cst_9 : f32 to vector<16x1xf32>
    %10 = arith.divf %8, %9 : vector<16x1xf32>
    %11 = vector.broadcast %10 : vector<16x1xf32> to vector<16x32xf32>
    %12 = arith.subf %4, %11 : vector<16x32xf32>
    %13 = arith.mulf %12, %12 : vector<16x32xf32>
    %cst_10 = arith.constant dense<0.000000e+00> : vector<16xf32>
    %14 = vector.multi_reduction <add>, %13, %cst_10 [1] : vector<16x32xf32> to vector<16xf32>
    %15 = vector.shape_cast %14 : vector<16xf32> to vector<16x1xf32>
    %cst_11 = arith.constant 3.200000e+01 : f32
    %16 = vector.broadcast %cst_11 : f32 to vector<16x1xf32>
    %17 = arith.divf %15, %16 : vector<16x1xf32>
    %18 = vector.broadcast %10 : vector<16x1xf32> to vector<16x32xf32>
    %19 = arith.subf %4, %18 : vector<16x32xf32>
    %cst_12 = arith.constant 9.99999996E-13 : f32
    %20 = vector.broadcast %cst_12 : f32 to vector<16x1xf32>
    %21 = arith.addf %17, %20 : vector<16x1xf32>
    %22 = math.rsqrt %21 : vector<16x1xf32>
    %23 = vector.broadcast %22 : vector<16x1xf32> to vector<16x32xf32>
    %24 = arith.mulf %19, %23 : vector<16x32xf32>
    %25 = vector.broadcast %5 : vector<1x32xf32> to vector<16x32xf32>
    %26 = arith.mulf %24, %25 : vector<16x32xf32>
    %27 = vector.broadcast %6 : vector<1x32xf32> to vector<16x32xf32>
    %28 = arith.addf %26, %27 : vector<16x32xf32>
    %c0_13 = arith.constant 0 : index
    %c0_14 = arith.constant 0 : index
    %29 = vector.load %arg3[%c0_13, %c0_14] : memref<16x16xf32, #tpu.memory_space<vmem>>, vector<16x16xf32>
    %30 = arith.truncf %28 : vector<16x32xf32> to vector<16x32xbf16>
    %c0_15 = arith.constant 0 : index
    %c0_16 = arith.constant 0 : index
    %31 = vector.load %arg5[%c0_15, %c0_16] : memref<64x96xbf16, #tpu.memory_space<vmem>>, vector<32x96xbf16>
    %cst_17 = arith.constant dense<0.000000e+00> : vector<16x96xf32>
    %32 = tpu.matmul %30, %31, %cst_17 {dimension_numbers = #tpu.dot_dimension_numbers<[1], [0], [0], [1], [0, 0, 1, 1], [], []>} : vector<16x32xbf16>, vector<32x96xbf16>, vector<16x96xf32> -> vector<16x96xf32>
    %c2 = arith.constant 2 : index
    %c0_18 = arith.constant 0 : index
    %33 = vector.load %arg7[%c2, %c0_18] : memref<24x128xf32, #tpu.memory_space<vmem>>, vector<1x96xf32>
    %34 = vector.broadcast %33 : vector<1x96xf32> to vector<16x96xf32>
    %35 = arith.addf %32, %34 : vector<16x96xf32>
    %36 = vector.extract_strided_slice %35 {offsets = [0, 0], sizes = [16, 16], strides = [1, 1]} : vector<16x96xf32> to vector<16x16xf32>
    %37 = vector.extract_strided_slice %35 {offsets = [0, 32], sizes = [16, 16], strides = [1, 1]} : vector<16x96xf32> to vector<16x16xf32>
    %38 = vector.extract_strided_slice %35 {offsets = [0, 64], sizes = [16, 16], strides = [1, 1]} : vector<16x96xf32> to vector<16x16xf32>
    %39 = arith.truncf %36 : vector<16x16xf32> to vector<16x16xbf16>
    %40 = arith.truncf %37 : vector<16x16xf32> to vector<16x16xbf16>
    %cst_19 = arith.constant dense<0.000000e+00> : vector<16x16xf32>
    %41 = tpu.matmul %39, %40, %cst_19 {dimension_numbers = #tpu.dot_dimension_numbers<[1], [1], [0], [0], [0, 0, 1, 0], [], []>} : vector<16x16xbf16>, vector<16x16xbf16>, vector<16x16xf32> -> vector<16x16xf32>
    %cst_20 = arith.constant 2.500000e-01 : f32
    %42 = vector.broadcast %cst_20 : f32 to vector<16x16xf32>
    %43 = arith.mulf %41, %42 : vector<16x16xf32>
    %44 = arith.addf %43, %29 : vector<16x16xf32>
    %cst_21 = arith.constant dense<0xFF800000> : vector<16xf32>
    %45 = vector.multi_reduction <maximumf>, %44, %cst_21 [1] : vector<16x16xf32> to vector<16xf32>
    %46 = vector.shape_cast %45 : vector<16xf32> to vector<16x1xf32>
    %47 = vector.broadcast %46 : vector<16x1xf32> to vector<16x16xf32>
    %48 = arith.subf %44, %47 : vector<16x16xf32>
    %49 = math.exp %48 : vector<16x16xf32>
    %cst_22 = arith.constant dense<0.000000e+00> : vector<16xf32>
    %50 = vector.multi_reduction <add>, %49, %cst_22 [1] : vector<16x16xf32> to vector<16xf32>
    %51 = vector.shape_cast %50 : vector<16xf32> to vector<16x1xf32>
    %52 = tpu.reciprocal %51 {approx = true} : vector<16x1xf32> -> vector<16x1xf32>
    %53 = vector.broadcast %52 : vector<16x1xf32> to vector<16x16xf32>
    %54 = arith.mulf %49, %53 : vector<16x16xf32>
    %55 = arith.truncf %54 : vector<16x16xf32> to vector<16x16xbf16>
    %56 = arith.truncf %38 : vector<16x16xf32> to vector<16x16xbf16>
    %cst_23 = arith.constant dense<0.000000e+00> : vector<16x16xf32>
    %57 = tpu.matmul %55, %56, %cst_23 {dimension_numbers = #tpu.dot_dimension_numbers<[1], [0], [0], [1], [0, 0, 1, 1], [], []>} : vector<16x16xbf16>, vector<16x16xbf16>, vector<16x16xf32> -> vector<16x16xf32>
    %58 = vector.extract_strided_slice %35 {offsets = [0, 16], sizes = [16, 16], strides = [1, 1]} : vector<16x96xf32> to vector<16x16xf32>
    %59 = vector.extract_strided_slice %35 {offsets = [0, 48], sizes = [16, 16], strides = [1, 1]} : vector<16x96xf32> to vector<16x16xf32>
    %60 = vector.extract_strided_slice %35 {offsets = [0, 80], sizes = [16, 16], strides = [1, 1]} : vector<16x96xf32> to vector<16x16xf32>
    %61 = arith.truncf %58 : vector<16x16xf32> to vector<16x16xbf16>
    %62 = arith.truncf %59 : vector<16x16xf32> to vector<16x16xbf16>
    %cst_24 = arith.constant dense<0.000000e+00> : vector<16x16xf32>
    %63 = tpu.matmul %61, %62, %cst_24 {dimension_numbers = #tpu.dot_dimension_numbers<[1], [1], [0], [0], [0, 0, 1, 0], [], []>} : vector<16x16xbf16>, vector<16x16xbf16>, vector<16x16xf32> -> vector<16x16xf32>
    %cst_25 = arith.constant 2.500000e-01 : f32
    %64 = vector.broadcast %cst_25 : f32 to vector<16x16xf32>
    %65 = arith.mulf %63, %64 : vector<16x16xf32>
    %66 = arith.addf %65, %29 : vector<16x16xf32>
    %cst_26 = arith.constant dense<0xFF800000> : vector<16xf32>
    %67 = vector.multi_reduction <maximumf>, %66, %cst_26 [1] : vector<16x16xf32> to vector<16xf32>
    %68 = vector.shape_cast %67 : vector<16xf32> to vector<16x1xf32>
    %69 = vector.broadcast %68 : vector<16x1xf32> to vector<16x16xf32>
    %70 = arith.subf %66, %69 : vector<16x16xf32>
    %71 = math.exp %70 : vector<16x16xf32>
    %cst_27 = arith.constant dense<0.000000e+00> : vector<16xf32>
    %72 = vector.multi_reduction <add>, %71, %cst_27 [1] : vector<16x16xf32> to vector<16xf32>
    %73 = vector.shape_cast %72 : vector<16xf32> to vector<16x1xf32>
    %74 = tpu.reciprocal %73 {approx = true} : vector<16x1xf32> -> vector<16x1xf32>
    %75 = vector.broadcast %74 : vector<16x1xf32> to vector<16x16xf32>
    %76 = arith.mulf %71, %75 : vector<16x16xf32>
    %77 = arith.truncf %76 : vector<16x16xf32> to vector<16x16xbf16>
    %78 = arith.truncf %60 : vector<16x16xf32> to vector<16x16xbf16>
    %cst_28 = arith.constant dense<0.000000e+00> : vector<16x16xf32>
    %79 = tpu.matmul %77, %78, %cst_28 {dimension_numbers = #tpu.dot_dimension_numbers<[1], [0], [0], [1], [0, 0, 1, 1], [], []>} : vector<16x16xbf16>, vector<16x16xbf16>, vector<16x16xf32> -> vector<16x16xf32>
    %80 = tpu.concatenate %57, %79 in 1 : vector<16x16xf32>, vector<16x16xf32> -> vector<16x32xf32>
    %81 = arith.truncf %80 : vector<16x32xf32> to vector<16x32xbf16>
    %c128 = arith.constant 128 : index
    %c0_29 = arith.constant 0 : index
    %82 = vector.load %arg4[%c128, %c0_29] : memref<352x32xbf16, #tpu.memory_space<vmem>>, vector<32x32xbf16>
    %cst_30 = arith.constant dense<0.000000e+00> : vector<16x32xf32>
    %83 = tpu.matmul %81, %82, %cst_30 {dimension_numbers = #tpu.dot_dimension_numbers<[1], [0], [0], [1], [0, 0, 1, 1], [], []>} : vector<16x32xbf16>, vector<32x32xbf16>, vector<16x32xf32> -> vector<16x32xf32>
    %c3 = arith.constant 3 : index
    %c0_31 = arith.constant 0 : index
    %84 = vector.load %arg7[%c3, %c0_31] : memref<24x128xf32, #tpu.memory_space<vmem>>, vector<1x32xf32>
    %85 = vector.broadcast %84 : vector<1x32xf32> to vector<16x32xf32>
    %86 = arith.addf %83, %85 : vector<16x32xf32>
    %87 = arith.addf %86, %28 : vector<16x32xf32>
    %c4 = arith.constant 4 : index
    %c0_32 = arith.constant 0 : index
    %88 = vector.load %arg7[%c4, %c0_32] : memref<24x128xf32, #tpu.memory_space<vmem>>, vector<1x32xf32>
    %c5 = arith.constant 5 : index
    %c0_33 = arith.constant 0 : index
    %89 = vector.load %arg7[%c5, %c0_33] : memref<24x128xf32, #tpu.memory_space<vmem>>, vector<1x32xf32>
    %cst_34 = arith.constant dense<0.000000e+00> : vector<16xf32>
    %90 = vector.multi_reduction <add>, %87, %cst_34 [1] : vector<16x32xf32> to vector<16xf32>
    %91 = vector.shape_cast %90 : vector<16xf32> to vector<16x1xf32>
    %cst_35 = arith.constant 3.200000e+01 : f32
    %92 = vector.broadcast %cst_35 : f32 to vector<16x1xf32>
    %93 = arith.divf %91, %92 : vector<16x1xf32>
    %94 = vector.broadcast %93 : vector<16x1xf32> to vector<16x32xf32>
    %95 = arith.subf %87, %94 : vector<16x32xf32>
    %96 = arith.mulf %95, %95 : vector<16x32xf32>
    %cst_36 = arith.constant dense<0.000000e+00> : vector<16xf32>
    %97 = vector.multi_reduction <add>, %96, %cst_36 [1] : vector<16x32xf32> to vector<16xf32>
    %98 = vector.shape_cast %97 : vector<16xf32> to vector<16x1xf32>
    %cst_37 = arith.constant 3.200000e+01 : f32
    %99 = vector.broadcast %cst_37 : f32 to vector<16x1xf32>
    %100 = arith.divf %98, %99 : vector<16x1xf32>
    %101 = vector.broadcast %93 : vector<16x1xf32> to vector<16x32xf32>
    %102 = arith.subf %87, %101 : vector<16x32xf32>
    %cst_38 = arith.constant 9.99999996E-13 : f32
    %103 = vector.broadcast %cst_38 : f32 to vector<16x1xf32>
    %104 = arith.addf %100, %103 : vector<16x1xf32>
    %105 = math.rsqrt %104 : vector<16x1xf32>
    %106 = vector.broadcast %105 : vector<16x1xf32> to vector<16x32xf32>
    %107 = arith.mulf %102, %106 : vector<16x32xf32>
    %108 = vector.broadcast %88 : vector<1x32xf32> to vector<16x32xf32>
    %109 = arith.mulf %107, %108 : vector<16x32xf32>
    %110 = vector.broadcast %89 : vector<1x32xf32> to vector<16x32xf32>
    %111 = arith.addf %109, %110 : vector<16x32xf32>
    %112 = arith.truncf %111 : vector<16x32xf32> to vector<16x32xbf16>
    %c0_39 = arith.constant 0 : index
    %c0_40 = arith.constant 0 : index
    %113 = vector.load %arg6[%c0_39, %c0_40] : memref<64x64xbf16, #tpu.memory_space<vmem>>, vector<32x64xbf16>
    %cst_41 = arith.constant dense<0.000000e+00> : vector<16x64xf32>
    %114 = tpu.matmul %112, %113, %cst_41 {dimension_numbers = #tpu.dot_dimension_numbers<[1], [0], [0], [1], [0, 0, 1, 1], [], []>} : vector<16x32xbf16>, vector<32x64xbf16>, vector<16x64xf32> -> vector<16x64xf32>
    %c6 = arith.constant 6 : index
    %c0_42 = arith.constant 0 : index
    %115 = vector.load %arg7[%c6, %c0_42] : memref<24x128xf32, #tpu.memory_space<vmem>>, vector<1x64xf32>
    %116 = vector.broadcast %115 : vector<1x64xf32> to vector<16x64xf32>
    %117 = arith.addf %114, %116 : vector<16x64xf32>
    %cst_43 = arith.constant 5.000000e-01 : f32
    %118 = vector.broadcast %cst_43 : f32 to vector<16x64xf32>
    %119 = arith.mulf %118, %117 : vector<16x64xf32>
    %cst_44 = arith.constant 4.471500e-02 : f32
    %120 = vector.broadcast %cst_44 : f32 to vector<16x64xf32>
    %121 = arith.mulf %120, %117 : vector<16x64xf32>
    %122 = arith.mulf %121, %117 : vector<16x64xf32>
    %123 = arith.mulf %122, %117 : vector<16x64xf32>
    %124 = arith.addf %117, %123 : vector<16x64xf32>
    %cst_45 = arith.constant 0.797884583 : f32
    %125 = vector.broadcast %cst_45 : f32 to vector<16x64xf32>
    %126 = arith.mulf %125, %124 : vector<16x64xf32>
    %127 = math.tanh %126 : vector<16x64xf32>
    %cst_46 = arith.constant 1.000000e+00 : f32
    %128 = vector.broadcast %cst_46 : f32 to vector<16x64xf32>
    %129 = arith.addf %128, %127 : vector<16x64xf32>
    %130 = arith.mulf %119, %129 : vector<16x64xf32>
    %131 = arith.truncf %130 : vector<16x64xf32> to vector<16x64xbf16>
    %c192 = arith.constant 192 : index
    %c0_47 = arith.constant 0 : index
    %132 = vector.load %arg4[%c192, %c0_47] : memref<352x32xbf16, #tpu.memory_space<vmem>>, vector<64x32xbf16>
    %cst_48 = arith.constant dense<0.000000e+00> : vector<16x32xf32>
    %133 = tpu.matmul %131, %132, %cst_48 {dimension_numbers = #tpu.dot_dimension_numbers<[1], [0], [0], [1], [0, 0, 1, 1], [], []>} : vector<16x64xbf16>, vector<64x32xbf16>, vector<16x32xf32> -> vector<16x32xf32>
    %c7 = arith.constant 7 : index
    %c0_49 = arith.constant 0 : index
    %134 = vector.load %arg7[%c7, %c0_49] : memref<24x128xf32, #tpu.memory_space<vmem>>, vector<1x32xf32>
    %135 = vector.broadcast %134 : vector<1x32xf32> to vector<16x32xf32>
    %136 = arith.addf %133, %135 : vector<16x32xf32>
    %137 = arith.addf %136, %111 : vector<16x32xf32>
    %c8 = arith.constant 8 : index
    %c0_50 = arith.constant 0 : index
    %138 = vector.load %arg7[%c8, %c0_50] : memref<24x128xf32, #tpu.memory_space<vmem>>, vector<1x32xf32>
    %c9 = arith.constant 9 : index
    %c0_51 = arith.constant 0 : index
    %139 = vector.load %arg7[%c9, %c0_51] : memref<24x128xf32, #tpu.memory_space<vmem>>, vector<1x32xf32>
    %cst_52 = arith.constant dense<0.000000e+00> : vector<16xf32>
    %140 = vector.multi_reduction <add>, %137, %cst_52 [1] : vector<16x32xf32> to vector<16xf32>
    %141 = vector.shape_cast %140 : vector<16xf32> to vector<16x1xf32>
    %cst_53 = arith.constant 3.200000e+01 : f32
    %142 = vector.broadcast %cst_53 : f32 to vector<16x1xf32>
    %143 = arith.divf %141, %142 : vector<16x1xf32>
    %144 = vector.broadcast %143 : vector<16x1xf32> to vector<16x32xf32>
    %145 = arith.subf %137, %144 : vector<16x32xf32>
    %146 = arith.mulf %145, %145 : vector<16x32xf32>
    %cst_54 = arith.constant dense<0.000000e+00> : vector<16xf32>
    %147 = vector.multi_reduction <add>, %146, %cst_54 [1] : vector<16x32xf32> to vector<16xf32>
    %148 = vector.shape_cast %147 : vector<16xf32> to vector<16x1xf32>
    %cst_55 = arith.constant 3.200000e+01 : f32
    %149 = vector.broadcast %cst_55 : f32 to vector<16x1xf32>
    %150 = arith.divf %148, %149 : vector<16x1xf32>
    %151 = vector.broadcast %143 : vector<16x1xf32> to vector<16x32xf32>
    %152 = arith.subf %137, %151 : vector<16x32xf32>
    %cst_56 = arith.constant 9.99999996E-13 : f32
    %153 = vector.broadcast %cst_56 : f32 to vector<16x1xf32>
    %154 = arith.addf %150, %153 : vector<16x1xf32>
    %155 = math.rsqrt %154 : vector<16x1xf32>
    %156 = vector.broadcast %155 : vector<16x1xf32> to vector<16x32xf32>
    %157 = arith.mulf %152, %156 : vector<16x32xf32>
    %158 = vector.broadcast %138 : vector<1x32xf32> to vector<16x32xf32>
    %159 = arith.mulf %157, %158 : vector<16x32xf32>
    %160 = vector.broadcast %139 : vector<1x32xf32> to vector<16x32xf32>
    %161 = arith.addf %159, %160 : vector<16x32xf32>
    %162 = arith.truncf %161 : vector<16x32xf32> to vector<16x32xbf16>
    %c32 = arith.constant 32 : index
    %c0_57 = arith.constant 0 : index
    %163 = vector.load %arg5[%c32, %c0_57] : memref<64x96xbf16, #tpu.memory_space<vmem>>, vector<32x96xbf16>
    %cst_58 = arith.constant dense<0.000000e+00> : vector<16x96xf32>
    %164 = tpu.matmul %162, %163, %cst_58 {dimension_numbers = #tpu.dot_dimension_numbers<[1], [0], [0], [1], [0, 0, 1, 1], [], []>} : vector<16x32xbf16>, vector<32x96xbf16>, vector<16x96xf32> -> vector<16x96xf32>
    %c10 = arith.constant 10 : index
    %c0_59 = arith.constant 0 : index
    %165 = vector.load %arg7[%c10, %c0_59] : memref<24x128xf32, #tpu.memory_space<vmem>>, vector<1x96xf32>
    %166 = vector.broadcast %165 : vector<1x96xf32> to vector<16x96xf32>
    %167 = arith.addf %164, %166 : vector<16x96xf32>
    %168 = vector.extract_strided_slice %167 {offsets = [0, 0], sizes = [16, 16], strides = [1, 1]} : vector<16x96xf32> to vector<16x16xf32>
    %169 = vector.extract_strided_slice %167 {offsets = [0, 32], sizes = [16, 16], strides = [1, 1]} : vector<16x96xf32> to vector<16x16xf32>
    %170 = vector.extract_strided_slice %167 {offsets = [0, 64], sizes = [16, 16], strides = [1, 1]} : vector<16x96xf32> to vector<16x16xf32>
    %171 = arith.truncf %168 : vector<16x16xf32> to vector<16x16xbf16>
    %172 = arith.truncf %169 : vector<16x16xf32> to vector<16x16xbf16>
    %cst_60 = arith.constant dense<0.000000e+00> : vector<16x16xf32>
    %173 = tpu.matmul %171, %172, %cst_60 {dimension_numbers = #tpu.dot_dimension_numbers<[1], [1], [0], [0], [0, 0, 1, 0], [], []>} : vector<16x16xbf16>, vector<16x16xbf16>, vector<16x16xf32> -> vector<16x16xf32>
    %cst_61 = arith.constant 2.500000e-01 : f32
    %174 = vector.broadcast %cst_61 : f32 to vector<16x16xf32>
    %175 = arith.mulf %173, %174 : vector<16x16xf32>
    %176 = arith.addf %175, %29 : vector<16x16xf32>
    %cst_62 = arith.constant dense<0xFF800000> : vector<16xf32>
    %177 = vector.multi_reduction <maximumf>, %176, %cst_62 [1] : vector<16x16xf32> to vector<16xf32>
    %178 = vector.shape_cast %177 : vector<16xf32> to vector<16x1xf32>
    %179 = vector.broadcast %178 : vector<16x1xf32> to vector<16x16xf32>
    %180 = arith.subf %176, %179 : vector<16x16xf32>
    %181 = math.exp %180 : vector<16x16xf32>
    %cst_63 = arith.constant dense<0.000000e+00> : vector<16xf32>
    %182 = vector.multi_reduction <add>, %181, %cst_63 [1] : vector<16x16xf32> to vector<16xf32>
    %183 = vector.shape_cast %182 : vector<16xf32> to vector<16x1xf32>
    %184 = tpu.reciprocal %183 {approx = true} : vector<16x1xf32> -> vector<16x1xf32>
    %185 = vector.broadcast %184 : vector<16x1xf32> to vector<16x16xf32>
    %186 = arith.mulf %181, %185 : vector<16x16xf32>
    %187 = arith.truncf %186 : vector<16x16xf32> to vector<16x16xbf16>
    %188 = arith.truncf %170 : vector<16x16xf32> to vector<16x16xbf16>
    %cst_64 = arith.constant dense<0.000000e+00> : vector<16x16xf32>
    %189 = tpu.matmul %187, %188, %cst_64 {dimension_numbers = #tpu.dot_dimension_numbers<[1], [0], [0], [1], [0, 0, 1, 1], [], []>} : vector<16x16xbf16>, vector<16x16xbf16>, vector<16x16xf32> -> vector<16x16xf32>
    %190 = vector.extract_strided_slice %167 {offsets = [0, 16], sizes = [16, 16], strides = [1, 1]} : vector<16x96xf32> to vector<16x16xf32>
    %191 = vector.extract_strided_slice %167 {offsets = [0, 48], sizes = [16, 16], strides = [1, 1]} : vector<16x96xf32> to vector<16x16xf32>
    %192 = vector.extract_strided_slice %167 {offsets = [0, 80], sizes = [16, 16], strides = [1, 1]} : vector<16x96xf32> to vector<16x16xf32>
    %193 = arith.truncf %190 : vector<16x16xf32> to vector<16x16xbf16>
    %194 = arith.truncf %191 : vector<16x16xf32> to vector<16x16xbf16>
    %cst_65 = arith.constant dense<0.000000e+00> : vector<16x16xf32>
    %195 = tpu.matmul %193, %194, %cst_65 {dimension_numbers = #tpu.dot_dimension_numbers<[1], [1], [0], [0], [0, 0, 1, 0], [], []>} : vector<16x16xbf16>, vector<16x16xbf16>, vector<16x16xf32> -> vector<16x16xf32>
    %cst_66 = arith.constant 2.500000e-01 : f32
    %196 = vector.broadcast %cst_66 : f32 to vector<16x16xf32>
    %197 = arith.mulf %195, %196 : vector<16x16xf32>
    %198 = arith.addf %197, %29 : vector<16x16xf32>
    %cst_67 = arith.constant dense<0xFF800000> : vector<16xf32>
    %199 = vector.multi_reduction <maximumf>, %198, %cst_67 [1] : vector<16x16xf32> to vector<16xf32>
    %200 = vector.shape_cast %199 : vector<16xf32> to vector<16x1xf32>
    %201 = vector.broadcast %200 : vector<16x1xf32> to vector<16x16xf32>
    %202 = arith.subf %198, %201 : vector<16x16xf32>
    %203 = math.exp %202 : vector<16x16xf32>
    %cst_68 = arith.constant dense<0.000000e+00> : vector<16xf32>
    %204 = vector.multi_reduction <add>, %203, %cst_68 [1] : vector<16x16xf32> to vector<16xf32>
    %205 = vector.shape_cast %204 : vector<16xf32> to vector<16x1xf32>
    %206 = tpu.reciprocal %205 {approx = true} : vector<16x1xf32> -> vector<16x1xf32>
    %207 = vector.broadcast %206 : vector<16x1xf32> to vector<16x16xf32>
    %208 = arith.mulf %203, %207 : vector<16x16xf32>
    %209 = arith.truncf %208 : vector<16x16xf32> to vector<16x16xbf16>
    %210 = arith.truncf %192 : vector<16x16xf32> to vector<16x16xbf16>
    %cst_69 = arith.constant dense<0.000000e+00> : vector<16x16xf32>
    %211 = tpu.matmul %209, %210, %cst_69 {dimension_numbers = #tpu.dot_dimension_numbers<[1], [0], [0], [1], [0, 0, 1, 1], [], []>} : vector<16x16xbf16>, vector<16x16xbf16>, vector<16x16xf32> -> vector<16x16xf32>
    %212 = tpu.concatenate %189, %211 in 1 : vector<16x16xf32>, vector<16x16xf32> -> vector<16x32xf32>
    %213 = arith.truncf %212 : vector<16x32xf32> to vector<16x32xbf16>
    %c160 = arith.constant 160 : index
    %c0_70 = arith.constant 0 : index
    %214 = vector.load %arg4[%c160, %c0_70] : memref<352x32xbf16, #tpu.memory_space<vmem>>, vector<32x32xbf16>
    %cst_71 = arith.constant dense<0.000000e+00> : vector<16x32xf32>
    %215 = tpu.matmul %213, %214, %cst_71 {dimension_numbers = #tpu.dot_dimension_numbers<[1], [0], [0], [1], [0, 0, 1, 1], [], []>} : vector<16x32xbf16>, vector<32x32xbf16>, vector<16x32xf32> -> vector<16x32xf32>
    %c11 = arith.constant 11 : index
    %c0_72 = arith.constant 0 : index
    %216 = vector.load %arg7[%c11, %c0_72] : memref<24x128xf32, #tpu.memory_space<vmem>>, vector<1x32xf32>
    %217 = vector.broadcast %216 : vector<1x32xf32> to vector<16x32xf32>
    %218 = arith.addf %215, %217 : vector<16x32xf32>
    %219 = arith.addf %218, %161 : vector<16x32xf32>
    %c12 = arith.constant 12 : index
    %c0_73 = arith.constant 0 : index
    %220 = vector.load %arg7[%c12, %c0_73] : memref<24x128xf32, #tpu.memory_space<vmem>>, vector<1x32xf32>
    %c13 = arith.constant 13 : index
    %c0_74 = arith.constant 0 : index
    %221 = vector.load %arg7[%c13, %c0_74] : memref<24x128xf32, #tpu.memory_space<vmem>>, vector<1x32xf32>
    %cst_75 = arith.constant dense<0.000000e+00> : vector<16xf32>
    %222 = vector.multi_reduction <add>, %219, %cst_75 [1] : vector<16x32xf32> to vector<16xf32>
    %223 = vector.shape_cast %222 : vector<16xf32> to vector<16x1xf32>
    %cst_76 = arith.constant 3.200000e+01 : f32
    %224 = vector.broadcast %cst_76 : f32 to vector<16x1xf32>
    %225 = arith.divf %223, %224 : vector<16x1xf32>
    %226 = vector.broadcast %225 : vector<16x1xf32> to vector<16x32xf32>
    %227 = arith.subf %219, %226 : vector<16x32xf32>
    %228 = arith.mulf %227, %227 : vector<16x32xf32>
    %cst_77 = arith.constant dense<0.000000e+00> : vector<16xf32>
    %229 = vector.multi_reduction <add>, %228, %cst_77 [1] : vector<16x32xf32> to vector<16xf32>
    %230 = vector.shape_cast %229 : vector<16xf32> to vector<16x1xf32>
    %cst_78 = arith.constant 3.200000e+01 : f32
    %231 = vector.broadcast %cst_78 : f32 to vector<16x1xf32>
    %232 = arith.divf %230, %231 : vector<16x1xf32>
    %233 = vector.broadcast %225 : vector<16x1xf32> to vector<16x32xf32>
    %234 = arith.subf %219, %233 : vector<16x32xf32>
    %cst_79 = arith.constant 9.99999996E-13 : f32
    %235 = vector.broadcast %cst_79 : f32 to vector<16x1xf32>
    %236 = arith.addf %232, %235 : vector<16x1xf32>
    %237 = math.rsqrt %236 : vector<16x1xf32>
    %238 = vector.broadcast %237 : vector<16x1xf32> to vector<16x32xf32>
    %239 = arith.mulf %234, %238 : vector<16x32xf32>
    %240 = vector.broadcast %220 : vector<1x32xf32> to vector<16x32xf32>
    %241 = arith.mulf %239, %240 : vector<16x32xf32>
    %242 = vector.broadcast %221 : vector<1x32xf32> to vector<16x32xf32>
    %243 = arith.addf %241, %242 : vector<16x32xf32>
    %244 = arith.truncf %243 : vector<16x32xf32> to vector<16x32xbf16>
    %c32_80 = arith.constant 32 : index
    %c0_81 = arith.constant 0 : index
    %245 = vector.load %arg6[%c32_80, %c0_81] : memref<64x64xbf16, #tpu.memory_space<vmem>>, vector<32x64xbf16>
    %cst_82 = arith.constant dense<0.000000e+00> : vector<16x64xf32>
    %246 = tpu.matmul %244, %245, %cst_82 {dimension_numbers = #tpu.dot_dimension_numbers<[1], [0], [0], [1], [0, 0, 1, 1], [], []>} : vector<16x32xbf16>, vector<32x64xbf16>, vector<16x64xf32> -> vector<16x64xf32>
    %c14 = arith.constant 14 : index
    %c0_83 = arith.constant 0 : index
    %247 = vector.load %arg7[%c14, %c0_83] : memref<24x128xf32, #tpu.memory_space<vmem>>, vector<1x64xf32>
    %248 = vector.broadcast %247 : vector<1x64xf32> to vector<16x64xf32>
    %249 = arith.addf %246, %248 : vector<16x64xf32>
    %cst_84 = arith.constant 5.000000e-01 : f32
    %250 = vector.broadcast %cst_84 : f32 to vector<16x64xf32>
    %251 = arith.mulf %250, %249 : vector<16x64xf32>
    %cst_85 = arith.constant 4.471500e-02 : f32
    %252 = vector.broadcast %cst_85 : f32 to vector<16x64xf32>
    %253 = arith.mulf %252, %249 : vector<16x64xf32>
    %254 = arith.mulf %253, %249 : vector<16x64xf32>
    %255 = arith.mulf %254, %249 : vector<16x64xf32>
    %256 = arith.addf %249, %255 : vector<16x64xf32>
    %cst_86 = arith.constant 0.797884583 : f32
    %257 = vector.broadcast %cst_86 : f32 to vector<16x64xf32>
    %258 = arith.mulf %257, %256 : vector<16x64xf32>
    %259 = math.tanh %258 : vector<16x64xf32>
    %cst_87 = arith.constant 1.000000e+00 : f32
    %260 = vector.broadcast %cst_87 : f32 to vector<16x64xf32>
    %261 = arith.addf %260, %259 : vector<16x64xf32>
    %262 = arith.mulf %251, %261 : vector<16x64xf32>
    %263 = arith.truncf %262 : vector<16x64xf32> to vector<16x64xbf16>
    %c256 = arith.constant 256 : index
    %c0_88 = arith.constant 0 : index
    %264 = vector.load %arg4[%c256, %c0_88] : memref<352x32xbf16, #tpu.memory_space<vmem>>, vector<64x32xbf16>
    %cst_89 = arith.constant dense<0.000000e+00> : vector<16x32xf32>
    %265 = tpu.matmul %263, %264, %cst_89 {dimension_numbers = #tpu.dot_dimension_numbers<[1], [0], [0], [1], [0, 0, 1, 1], [], []>} : vector<16x64xbf16>, vector<64x32xbf16>, vector<16x32xf32> -> vector<16x32xf32>
    %c15 = arith.constant 15 : index
    %c0_90 = arith.constant 0 : index
    %266 = vector.load %arg7[%c15, %c0_90] : memref<24x128xf32, #tpu.memory_space<vmem>>, vector<1x32xf32>
    %267 = vector.broadcast %266 : vector<1x32xf32> to vector<16x32xf32>
    %268 = arith.addf %265, %267 : vector<16x32xf32>
    %269 = arith.addf %268, %243 : vector<16x32xf32>
    %c16 = arith.constant 16 : index
    %c0_91 = arith.constant 0 : index
    %270 = vector.load %arg7[%c16, %c0_91] : memref<24x128xf32, #tpu.memory_space<vmem>>, vector<1x32xf32>
    %c17 = arith.constant 17 : index
    %c0_92 = arith.constant 0 : index
    %271 = vector.load %arg7[%c17, %c0_92] : memref<24x128xf32, #tpu.memory_space<vmem>>, vector<1x32xf32>
    %cst_93 = arith.constant dense<0.000000e+00> : vector<16xf32>
    %272 = vector.multi_reduction <add>, %269, %cst_93 [1] : vector<16x32xf32> to vector<16xf32>
    %273 = vector.shape_cast %272 : vector<16xf32> to vector<16x1xf32>
    %cst_94 = arith.constant 3.200000e+01 : f32
    %274 = vector.broadcast %cst_94 : f32 to vector<16x1xf32>
    %275 = arith.divf %273, %274 : vector<16x1xf32>
    %276 = vector.broadcast %275 : vector<16x1xf32> to vector<16x32xf32>
    %277 = arith.subf %269, %276 : vector<16x32xf32>
    %278 = arith.mulf %277, %277 : vector<16x32xf32>
    %cst_95 = arith.constant dense<0.000000e+00> : vector<16xf32>
    %279 = vector.multi_reduction <add>, %278, %cst_95 [1] : vector<16x32xf32> to vector<16xf32>
    %280 = vector.shape_cast %279 : vector<16xf32> to vector<16x1xf32>
    %cst_96 = arith.constant 3.200000e+01 : f32
    %281 = vector.broadcast %cst_96 : f32 to vector<16x1xf32>
    %282 = arith.divf %280, %281 : vector<16x1xf32>
    %283 = vector.broadcast %275 : vector<16x1xf32> to vector<16x32xf32>
    %284 = arith.subf %269, %283 : vector<16x32xf32>
    %cst_97 = arith.constant 9.99999996E-13 : f32
    %285 = vector.broadcast %cst_97 : f32 to vector<16x1xf32>
    %286 = arith.addf %282, %285 : vector<16x1xf32>
    %287 = math.rsqrt %286 : vector<16x1xf32>
    %288 = vector.broadcast %287 : vector<16x1xf32> to vector<16x32xf32>
    %289 = arith.mulf %284, %288 : vector<16x32xf32>
    %290 = vector.broadcast %270 : vector<1x32xf32> to vector<16x32xf32>
    %291 = arith.mulf %289, %290 : vector<16x32xf32>
    %292 = vector.broadcast %271 : vector<1x32xf32> to vector<16x32xf32>
    %293 = arith.addf %291, %292 : vector<16x32xf32>
    %294 = vector.extract_strided_slice %293 {offsets = [0, 0], sizes = [1, 32], strides = [1, 1]} : vector<16x32xf32> to vector<1x32xf32>
    %295 = vector.extract_strided_slice %293 {offsets = [8, 0], sizes = [1, 32], strides = [1, 1]} : vector<16x32xf32> to vector<1x32xf32>
    %296 = tpu.concatenate %294, %295 in 0 : vector<1x32xf32>, vector<1x32xf32> -> vector<2x32xf32>
    %297 = arith.truncf %296 : vector<2x32xf32> to vector<2x32xbf16>
    %c320 = arith.constant 320 : index
    %c0_98 = arith.constant 0 : index
    %298 = vector.load %arg4[%c320, %c0_98] : memref<352x32xbf16, #tpu.memory_space<vmem>>, vector<32x32xbf16>
    %cst_99 = arith.constant dense<0.000000e+00> : vector<2x32xf32>
    %299 = tpu.matmul %297, %298, %cst_99 {dimension_numbers = #tpu.dot_dimension_numbers<[1], [0], [0], [1], [0, 0, 1, 1], [], []>} : vector<2x32xbf16>, vector<32x32xbf16>, vector<2x32xf32> -> vector<2x32xf32>
    %c18 = arith.constant 18 : index
    %c0_100 = arith.constant 0 : index
    %300 = vector.load %arg7[%c18, %c0_100] : memref<24x128xf32, #tpu.memory_space<vmem>>, vector<1x32xf32>
    %301 = vector.broadcast %300 : vector<1x32xf32> to vector<2x32xf32>
    %302 = arith.addf %299, %301 : vector<2x32xf32>
    %303 = math.tanh %302 : vector<2x32xf32>
    %c19 = arith.constant 19 : index
    %c0_101 = arith.constant 0 : index
    %304 = vector.load %arg7[%c19, %c0_101] : memref<24x128xf32, #tpu.memory_space<vmem>>, vector<1x32xf32>
    %305 = vector.broadcast %304 : vector<1x32xf32> to vector<2x32xf32>
    %306 = arith.mulf %303, %305 : vector<2x32xf32>
    %cst_102 = arith.constant dense<0.000000e+00> : vector<2xf32>
    %307 = vector.multi_reduction <add>, %306, %cst_102 [1] : vector<2x32xf32> to vector<2xf32>
    %308 = vector.shape_cast %307 : vector<2xf32> to vector<2x1xf32>
    %c20 = arith.constant 20 : index
    %c0_103 = arith.constant 0 : index
    %309 = vector.load %arg7[%c20, %c0_103] : memref<24x128xf32, #tpu.memory_space<vmem>>, vector<1x1xf32>
    %310 = vector.broadcast %309 : vector<1x1xf32> to vector<2x1xf32>
    %311 = arith.addf %308, %310 : vector<2x1xf32>
    %312 = arith.negf %311 : vector<2x1xf32>
    %313 = math.exp %312 : vector<2x1xf32>
    %cst_104 = arith.constant 1.000000e+00 : f32
    %314 = vector.broadcast %cst_104 : f32 to vector<2x1xf32>
    %315 = arith.addf %314, %313 : vector<2x1xf32>
    %316 = arith.divf %314, %315 : vector<2x1xf32>
    %c0_105 = arith.constant 0 : index
    %c0_106 = arith.constant 0 : index
    %317 = vector.load %arg8[%c0_105, %c0_106] : memref<2x1xf32, #tpu.memory_space<vmem>>, vector<2x1xf32>
    tpu.vector_store %arg8[%c0_105, %c0_106], %316 {strides = array<i32>} : memref<2x1xf32, #tpu.memory_space<vmem>>, vector<2x1xf32>,
    return
  }
  func.func @transform_0(%arg0: i32) -> (i32, i32) {
    %c0_i32 = arith.constant 0 : i32
    %c0_i32_0 = arith.constant 0 : i32
    %c0_i32_1 = arith.constant 0 : i32
    return %c0_i32, %c0_i32_0 : i32, i32
  }
  func.func @transform_1(%arg0: i32) -> (i32, i32) {
    %c0_i32 = arith.constant 0 : i32
    %c0_i32_0 = arith.constant 0 : i32
    %c0_i32_1 = arith.constant 0 : i32
    return %c0_i32, %c0_i32_0 : i32, i32
  }
  func.func @transform_2(%arg0: i32) -> (i32, i32) {
    %c0_i32 = arith.constant 0 : i32
    %c0_i32_0 = arith.constant 0 : i32
    %c0_i32_1 = arith.constant 0 : i32
    return %c0_i32, %c0_i32_0 : i32, i32
  }
  func.func @transform_3(%arg0: i32) -> (i32, i32) {
    %c0_i32 = arith.constant 0 : i32
    %c0_i32_0 = arith.constant 0 : i32
    %c0_i32_1 = arith.constant 0 : i32
    return %c0_i32, %c0_i32_0 : i32, i32
  }
  func.func @transform_4(%arg0: i32) -> (i32, i32) {
    %c0_i32 = arith.constant 0 : i32
    %c0_i32_0 = arith.constant 0 : i32
    %c0_i32_1 = arith.constant 0 : i32
    return %c0_i32, %c0_i32_0 : i32, i32
  }
  func.func @transform_5(%arg0: i32) -> (i32, i32) {
    %c0_i32 = arith.constant 0 : i32
    %c0_i32_0 = arith.constant 0 : i32
    %c0_i32_1 = arith.constant 0 : i32
    return %c0_i32, %c0_i32_0 : i32, i32
  }
  func.func @transform_6(%arg0: i32) -> (i32, i32) {
    %c0_i32 = arith.constant 0 : i32
    %c0_i32_0 = arith.constant 0 : i32
    %c0_i32_1 = arith.constant 0 : i32
    return %c0_i32, %c0_i32_0 : i32, i32
  }
  func.func @transform_7(%arg0: i32) -> (i32, i32) {
    %c0_i32 = arith.constant 0 : i32
    %c0_i32_0 = arith.constant 0 : i32
    %c0_i32_1 = arith.constant 0 : i32
    return %c0_i32, %c0_i32_0 : i32, i32
  }
}

</mosaic_0001>

<llo_original>
// kernel: eq.12
$region0: #{eq.12}
  %s0 = inlined_call_operand.vmem [shape: s32[2,8], index: 0, kind: input, shape index: {}]
  %s1 = inlined_call_operand.vmem [shape: s32[16], index: 1, kind: output, shape index: {}]
  $region1: #{eq.12} parent=0
    #allocation0 [shape = 'u8[4096]{0}', space=vmem, size = 0x1000, scoped, tag = 'scoped mem for output reshape']
    #allocation1 [shape = 'u8[4096]{0}', space=vmem, size = 0x1000, scoped, tag = 'scoped mem for input reshape']
    %s3 = sshllo.u32 0, 2
    %v4 = vld [vmem:[%s0] sm:%s3]
    %5 = vst [vmem:[#allocation1] sm:%s3] %v4
    %v6 = vld [vmem:[#allocation1] sm:$0x1]
    %vm7 = vcmask 64512
    %8 = vst.msk [vmem:[#allocation0] sm:$0x1] %vm7, %v6
    %s9 = scalar_lea.vmem [#allocation1], 1
    %v10 = vld [vmem:[%s9] sm:$0x1]
    %11 = vrot.lane.b32.xlu0 %v10, 8
    %v12 = vpop.permute.xlu0 %11
    %vm13 = vcmask 130112
    %14 = vst.msk [vmem:[#allocation0] sm:$0x1] %vm13, %v12
    %s16 = sshllo.u32 0, 1
    %v18 = vld [vmem:[#allocation0] sm:%s16]
    %s19 = sshllo.u32 0, 1
    %20 = vst [vmem:[%s1] sm:%s19] %v18

// kernel: neural_network_forward.1
$region0: #{neural_network_forward.1}
  #allocation0 [shape = 'u32[]', space=smem, size = 0x4, offset = 0x4, fixed_abs, tag = 'smem constant byte address 0x4 - core index']
  #allocation1 [shape = 'u32[144,128]{1,0:T(1,128)}', space=vmem, size = 0x12000, scoped, tag = 'internal scratch']
  %s0 = inlined_call_operand.vmem [shape: bf16[16,128], index: 0, kind: input, shape index: {}]
  %s1 = inlined_call_operand.vmem [shape: f32[16,32], index: 1, kind: input, shape index: {}]
  %s2 = inlined_call_operand.vmem [shape: f32[16,16], index: 2, kind: input, shape index: {}]
  %s3 = inlined_call_operand.vmem [shape: bf16[352,32], index: 3, kind: input, shape index: {}]
  %s4 = inlined_call_operand.vmem [shape: bf16[64,96], index: 4, kind: input, shape index: {}]
  %s5 = inlined_call_operand.vmem [shape: bf16[64,64], index: 5, kind: input, shape index: {}]
  %s6 = inlined_call_operand.vmem [shape: f32[24,128], index: 6, kind: input, shape index: {}]
  %s7 = inlined_call_operand.vmem [shape: f32[2,1], index: 7, kind: output, shape index: {}]
  %s8 = sld [smem:[#allocation0]]
  $region38: #{neural_network_forward.1} parent=0
    _
  %s10 = ssub.s32 1, %s8
  %s11 = scalar_select 0, %s10, %s8
  // Predicated region
  $region2: #{neural_network_forward.1} parent=0 // pred_check
    _
  $region3: #{neural_network_forward.1} parent=0 // pred_check_branch
    %13 = sbr.rel (0) target = $region5
  $region4: #{neural_network_forward.1} parent=0 // pred_region
    _
  $region5: #{neural_network_forward.1} parent=0 // pred_fallthru
    _
  // Predicated region
  $region6: #{neural_network_forward.1} parent=0 // pred_check
    _
  $region7: #{neural_network_forward.1} parent=0 // pred_check_branch
    %15 = sbr.rel (0) target = $region9
  $region8: #{neural_network_forward.1} parent=0 // pred_region
    _
  $region9: #{neural_network_forward.1} parent=0 // pred_fallthru
    _
  // Predicated region
  $region10: #{neural_network_forward.1} parent=0 // pred_check
    _
  $region11: #{neural_network_forward.1} parent=0 // pred_check_branch
    %17 = sbr.rel (0) target = $region13
  $region12: #{neural_network_forward.1} parent=0 // pred_region
    _
  $region13: #{neural_network_forward.1} parent=0 // pred_fallthru
    _
  // Predicated region
  $region14: #{neural_network_forward.1} parent=0 // pred_check
    _
  $region15: #{neural_network_forward.1} parent=0 // pred_check_branch
    %19 = sbr.rel (0) target = $region17
  $region16: #{neural_network_forward.1} parent=0 // pred_region
    _
  $region17: #{neural_network_forward.1} parent=0 // pred_fallthru
    _
  // Predicated region
  $region18: #{neural_network_forward.1} parent=0 // pred_check
    _
  $region19: #{neural_network_forward.1} parent=0 // pred_check_branch
    %21 = sbr.rel (0) target = $region21
  $region20: #{neural_network_forward.1} parent=0 // pred_region
    _
  $region21: #{neural_network_forward.1} parent=0 // pred_fallthru
    _
  // Predicated region
  $region22: #{neural_network_forward.1} parent=0 // pred_check
    _
  $region23: #{neural_network_forward.1} parent=0 // pred_check_branch
    %23 = sbr.rel (0) target = $region25
  $region24: #{neural_network_forward.1} parent=0 // pred_region
    _
  $region25: #{neural_network_forward.1} parent=0 // pred_fallthru
    _
  // Predicated region
  $region26: #{neural_network_forward.1} parent=0 // pred_check
    _
  $region27: #{neural_network_forward.1} parent=0 // pred_check_branch
    %25 = sbr.rel (0) target = $region29
  $region28: #{neural_network_forward.1} parent=0 // pred_region
    _
  $region29: #{neural_network_forward.1} parent=0 // pred_fallthru
    _
  %v27 = vld [vmem:[%s0] sm:$0xf]
  %v28 = vld [vmem:[%s0 + $0x4] sm:$0xf]
  %v29 = vld [vmem:[%s3] sm:$0xf]
  %v30 = vld [vmem:[%s3 + $0x4] sm:$0xf]
  %v31 = vld [vmem:[%s3 + $0x8] sm:$0xf]
  %v32 = vld [vmem:[%s3 + $0xc] sm:$0xf]
  %v33 = vld [vmem:[%s3 + $0x10] sm:$0xf]
  %v34 = vld [vmem:[%s3 + $0x14] sm:$0xf]
  %v35 = vld [vmem:[%s3 + $0x18] sm:$0xf]
  %v36 = vld [vmem:[%s3 + $0x1c] sm:$0xf]
  %v37 = vld [vmem:[%s3 + $0x20] sm:$0xf]
  %v38 = vld [vmem:[%s3 + $0x24] sm:$0xf]
  %v39 = vld [vmem:[%s3 + $0x28] sm:$0xf]
  %v40 = vld [vmem:[%s3 + $0x2c] sm:$0xf]
  %v41 = vld [vmem:[%s3 + $0x30] sm:$0xf]
  %v42 = vld [vmem:[%s3 + $0x34] sm:$0xf]
  %v43 = vld [vmem:[%s3 + $0x38] sm:$0xf]
  %v44 = vld [vmem:[%s3 + $0x3c] sm:$0xf]
  %v45 = vld [vmem:[%s1] sm:$0xff]
  %v46 = vld [vmem:[%s1 + $0x8] sm:$0xff]
  %v49 = vunpack.c.l.b16 %v27
  %v50 = vunpack.c.l.b16 %v28
  %v51 = vpack.c.b16 %v50, %v49
  %v69 = vunpack.c.l.b16 %v29
  %v70 = vunpack.c.l.b16 %v30
  %v71 = vunpack.c.l.b16 %v31
  %v72 = vunpack.c.l.b16 %v32
  %v73 = vunpack.c.l.b16 %v33
  %v74 = vunpack.c.l.b16 %v34
  %v75 = vunpack.c.l.b16 %v35
  %v76 = vunpack.c.l.b16 %v36
  %v77 = vunpack.c.l.b16 %v37
  %v78 = vunpack.c.l.b16 %v38
  %v79 = vunpack.c.l.b16 %v39
  %v80 = vunpack.c.l.b16 %v40
  %v81 = vunpack.c.l.b16 %v41
  %v82 = vunpack.c.l.b16 %v42
  %v83 = vunpack.c.l.b16 %v43
  %v84 = vunpack.c.l.b16 %v44
  %v85 = vpack.c.b16 %v70, %v69
  %v86 = vpack.c.b16 %v72, %v71
  %v87 = vpack.c.b16 %v74, %v73
  %v88 = vpack.c.b16 %v76, %v75
  %v89 = vpack.c.b16 %v78, %v77
  %v90 = vpack.c.b16 %v80, %v79
  %v91 = vpack.c.b16 %v82, %v81
  %v92 = vpack.c.b16 %v84, %v83
  %101 = vmatprep.subr.bf16.mxu0 0
  %102 = vmatpush1.bf16.msra.mxu0 %v85
  %103 = vmatprep.subr.bf16.mxu0 0
  %104 = vmatpush1.bf16.msra.mxu0 %v86
  %105 = vmatprep.subr.bf16.mxu0 0
  %106 = vmatpush1.bf16.msra.mxu0 %v87
  %107 = vmatprep.subr.bf16.mxu0 0
  %108 = vmatpush1.bf16.msra.mxu0 %v88
  %109 = vmatprep.subr.bf16.mxu0 0
  %110 = vmatpush1.bf16.msra.mxu0 %v89
  %111 = vmatprep.subr.bf16.mxu0 0
  %112 = vmatpush1.bf16.msra.mxu0 %v90
  %113 = vmatprep.subr.bf16.mxu0 0
  %114 = vmatpush1.bf16.msra.mxu0 %v91
  %115 = vmatprep.subr.bf16.mxu0 0
  %116 = vmatpush1.bf16.msra.mxu0 %v92
  %117 = vmatprep.subr.bf16.mxu0 0
  %118 = vmatpush1.bf16.msra.mxu0 0
  %119 = vmatprep.subr.bf16.mxu0 0
  %120 = vmatpush1.bf16.msra.mxu0 0
  %121 = vmatprep.subr.bf16.mxu0 0
  %122 = vmatpush1.bf16.msra.mxu0 0
  %123 = vmatprep.subr.bf16.mxu0 0
  %124 = vmatpush1.bf16.msra.mxu0 0
  %125 = vmatprep.subr.bf16.mxu0 0
  %126 = vmatpush1.bf16.msra.mxu0 0
  %127 = vmatprep.subr.bf16.mxu0 0
  %128 = vmatpush1.bf16.msra.mxu0 0
  %129 = vmatprep.subr.bf16.mxu0 0
  %130 = vmatpush1.bf16.msra.mxu0 0
  %131 = vmatprep.subr.bf16.mxu0 0
  %132 = vmatpush1.bf16.msra.mxu0 0
  %133 = vmatprep.mubr.bf16.mxu0 0
  %134 = vmatmul.mubr.bf16.gmra.mrb[0].mxu0 %v51
  %v135 = vpop.f32.mrb[0].mxu0
  %v136 = vadd.f32 %v45, %v135
  %v137 = vpop.f32.mrb[0].mxu0
  %v138 = vpop.f32.mrb[0].mxu0
  %v139 = vadd.f32 %v46, %v138
  %v140 = vpop.f32.mrb[0].mxu0
  %141 = vdwg.mxu0
  %v142 = vld [vmem:[%s6] sm:$0x1]
  %v143 = vld [vmem:[%s6 + $0x1] sm:$0x1]
  %vm144 = vcmask 261120
  %v145 = vsel %vm144, %v136, 0.0
  %146 = vadd.xlane.f32.xlu0 %v145
  %v147 = vpop.xlane.xlu0 %146
  %v148 = vsel %vm144, %v139, 0.0
  %149 = vadd.xlane.f32.xlu0 %v148
  %v150 = vpop.xlane.xlu0 %149
  %v151 = vrcp.pop 32.0
  %v152 = vmul.f32 %v147, %v151
  %v153 = vmul.f32 %v150, %v151
  %v154 = vsub.f32 %v136, %v152
  %v155 = vsub.f32 %v139, %v153
  %v156 = vmul.f32 %v154, %v154
  %v157 = vmul.f32 %v155, %v155
  %v158 = vsel %vm144, %v156, 0.0
  %159 = vadd.xlane.f32.xlu0 %v158
  %v160 = vpop.xlane.xlu0 %159
  %v161 = vsel %vm144, %v157, 0.0
  %162 = vadd.xlane.f32.xlu0 %v161
  %v163 = vpop.xlane.xlu0 %162
  %v164 = vmul.f32 %v160, %v151
  %v165 = vmul.f32 %v163, %v151
  %v166 = vadd.f32 %v164, 1e-12
  %v167 = vadd.f32 %v165, 1e-12
  %v168 = vrsqrt.pop %v166
  %v169 = vrsqrt.pop %v167
  %v170 = vmul.f32 %v154, %v168
  %v171 = vmul.f32 %v155, %v169
  %v172 = vlaneseq
  %v173 = vshrl.u32 %v172, 7
  %v174 = vsub.s32 0, %v173
  %v175 = vrot.slane %v142, %v174
  %v176 = vmul.f32 %v170, %v175
  %v177 = vmul.f32 %v171, %v175
  %v178 = vlaneseq
  %v179 = vshrl.u32 %v178, 7
  %v180 = vsub.s32 0, %v179
  %v181 = vrot.slane %v143, %v180
  %v182 = vadd.f32 %v176, %v181
  %v183 = vadd.f32 %v177, %v181
  %v184 = vld [vmem:[%s2] sm:$0xff]
  %v185 = vld [vmem:[%s2 + $0x8] sm:$0xff]
  %v186 = vpack.c.bf16 %v183, %v182
  %v187 = vld [vmem:[%s4] sm:$0xf]
  %v188 = vld [vmem:[%s4 + $0x4] sm:$0xf]
  %v189 = vld [vmem:[%s4 + $0x8] sm:$0xf]
  %v190 = vld [vmem:[%s4 + $0xc] sm:$0xf]
  %v191 = vld [vmem:[%s6 + $0x2] sm:$0x1]
  %v192 = vlaneseq
  %v193 = vshrl.u32 %v192, 7
  %v194 = vsub.s32 0, %v193
  %v195 = vrot.slane %v191, %v194
  %v200 = vunpack.c.l.b16 %v187
  %v201 = vunpack.c.l.b16 %v188
  %v202 = vunpack.c.l.b16 %v189
  %v203 = vunpack.c.l.b16 %v190
  %v204 = vpack.c.b16 %v201, %v200
  %v205 = vpack.c.b16 %v203, %v202
  %v209 = vsel %vm144, %v186, 0
  %211 = vmatprep.subr.bf16.mxu0 0
  %212 = vmatpush1.bf16.msra.mxu0 %v204
  %213 = vmatprep.subr.bf16.mxu0 0
  %214 = vmatpush1.bf16.msra.mxu0 %v205
  %215 = vmatprep.subr.bf16.mxu0 0
  %216 = vmatpush1.bf16.msra.mxu0 0
  %217 = vmatprep.subr.bf16.mxu0 0
  %218 = vmatpush1.bf16.msra.mxu0 0
  %219 = vmatprep.subr.bf16.mxu0 0
  %220 = vmatpush1.bf16.msra.mxu0 0
  %221 = vmatprep.subr.bf16.mxu0 0
  %222 = vmatpush1.bf16.msra.mxu0 0
  %223 = vmatprep.subr.bf16.mxu0 0
  %224 = vmatpush1.bf16.msra.mxu0 0
  %225 = vmatprep.subr.bf16.mxu0 0
  %226 = vmatpush1.bf16.msra.mxu0 0
  %227 = vmatprep.subr.bf16.mxu0 0
  %228 = vmatpush1.bf16.msra.mxu0 0
  %229 = vmatprep.subr.bf16.mxu0 0
  %230 = vmatpush1.bf16.msra.mxu0 0
  %231 = vmatprep.subr.bf16.mxu0 0
  %232 = vmatpush1.bf16.msra.mxu0 0
  %233 = vmatprep.subr.bf16.mxu0 0
  %234 = vmatpush1.bf16.msra.mxu0 0
  %235 = vmatprep.subr.bf16.mxu0 0
  %236 = vmatpush1.bf16.msra.mxu0 0
  %237 = vmatprep.subr.bf16.mxu0 0
  %238 = vmatpush1.bf16.msra.mxu0 0
  %239 = vmatprep.subr.bf16.mxu0 0
  %240 = vmatpush1.bf16.msra.mxu0 0
  %241 = vmatprep.subr.bf16.mxu0 0
  %242 = vmatpush1.bf16.msra.mxu0 0
  %243 = vmatprep.mubr.bf16.mxu0 0
  %244 = vmatmul.mubr.bf16.gmra.mrb[0].mxu0 %v209
  %v245 = vpop.f32.mrb[0].mxu0
  %v246 = vadd.f32 %v195, %v245
  %v247 = vpop.f32.mrb[0].mxu0
  %v248 = vpop.f32.mrb[0].mxu0
  %v249 = vadd.f32 %v195, %v248
  %v250 = vpop.f32.mrb[0].mxu0
  %251 = vdwg.mxu0
  %v252 = vpack.c.bf16 %v249, %v246
  %254 = vrot.lane.b32.xlu0 %v252, 96
  %v255 = vpop.permute.xlu0 %254
  %vm256 = vcmask 130048
  %v258 = vsel %vm256, %v252, 0
  %v261 = vsel %vm256, %v255, 0
  %263 = vmatprep.subr.bf16.mxu0 0
  %264 = vmatpush1.bf16.xpose.msra.mxu0 %v261
  %265 = vmatprep.subr.bf16.mxu0 0
  %266 = vmatpush1.bf16.xpose.msra.mxu0 0
  %267 = vmatprep.subr.bf16.mxu0 0
  %268 = vmatpush1.bf16.xpose.msra.mxu0 0
  %269 = vmatprep.subr.bf16.mxu0 0
  %270 = vmatpush1.bf16.xpose.msra.mxu0 0
  %271 = vmatprep.subr.bf16.mxu0 0
  %272 = vmatpush1.bf16.xpose.msra.mxu0 0
  %273 = vmatprep.subr.bf16.mxu0 0
  %274 = vmatpush1.bf16.xpose.msra.mxu0 0
  %275 = vmatprep.subr.bf16.mxu0 0
  %276 = vmatpush1.bf16.xpose.msra.mxu0 0
  %277 = vmatprep.subr.bf16.mxu0 0
  %278 = vmatpush1.bf16.xpose.msra.mxu0 0
  %279 = vmatprep.subr.bf16.mxu0 0
  %280 = vmatpush1.bf16.xpose.msra.mxu0 0
  %281 = vmatprep.subr.bf16.mxu0 0
  %282 = vmatpush1.bf16.xpose.msra.mxu0 0
  %283 = vmatprep.subr.bf16.mxu0 0
  %284 = vmatpush1.bf16.xpose.msra.mxu0 0
  %285 = vmatprep.subr.bf16.mxu0 0
  %286 = vmatpush1.bf16.xpose.msra.mxu0 0
  %287 = vmatprep.subr.bf16.mxu0 0
  %288 = vmatpush1.bf16.xpose.msra.mxu0 0
  %289 = vmatprep.subr.bf16.mxu0 0
  %290 = vmatpush1.bf16.xpose.msra.mxu0 0
  %291 = vmatprep.subr.bf16.mxu0 0
  %292 = vmatpush1.bf16.xpose.msra.mxu0 0
  %293 = vmatprep.subr.bf16.mxu0 0
  %294 = vmatpush1.bf16.xpose.msra.mxu0 0
  %295 = vmatprep.mubr.bf16.mxu0 0
  %296 = vmatmul.mubr.bf16.gmra.mrb[0].mxu0 %v258
  %v297 = vpop.f32.mrb[0].mxu0
  %v298 = vadd.f32 0.0, %v297
  %v299 = vpop.f32.mrb[0].mxu0
  %v300 = vpop.f32.mrb[0].mxu0
  %v301 = vadd.f32 0.0, %v300
  %v302 = vpop.f32.mrb[0].mxu0
  %303 = vdwg.mxu0
  %v304 = vmul.f32 %v298, 0.25
  %v305 = vmul.f32 %v301, 0.25
  %v306 = vadd.f32 %v304, %v184
  %v307 = vadd.f32 %v305, %v185
  %v308 = vsel %vm256, %v306, -inf
  %309 = vmax.xlane.f32.xlu0 %v308
  %v310 = vpop.xlane.xlu0 %309
  %v311 = vsel %vm256, %v307, -inf
  %312 = vmax.xlane.f32.xlu0 %v311
  %v313 = vpop.xlane.xlu0 %312
  %v314 = vsub.f32 %v306, %v310
  %v315 = vsub.f32 %v307, %v313
  %v316 = vmul.f32 %v314, 1.442695
  %v317 = vpow.pop %v316
  %v318 = vmul.f32 %v315, 1.442695
  %v319 = vpow.pop %v318
  %v320 = vsel %vm256, %v317, 0.0
  %321 = vadd.xlane.f32.xlu0 %v320
  %v322 = vpop.xlane.xlu0 %321
  %v323 = vsel %vm256, %v319, 0.0
  %324 = vadd.xlane.f32.xlu0 %v323
  %v325 = vpop.xlane.xlu0 %324
  %v326 = vrcp.pop %v322
  %v327 = vrcp.pop %v325
  %v328 = vmul.f32 %v317, %v326
  %v329 = vmul.f32 %v319, %v327
  %v330 = vpack.c.bf16 %v329, %v328
  %331 = vrot.lane.b32.xlu0 %v252, 64
  %v332 = vpop.permute.xlu0 %331
  %v335 = vsel %vm256, %v330, 0
  %337 = vmatprep.subr.bf16.mxu0 0
  %338 = vmatpush1.bf16.msra.mxu0 %v332
  %339 = vmatprep.subr.bf16.mxu0 0
  %340 = vmatpush1.bf16.msra.mxu0 0
  %341 = vmatprep.subr.bf16.mxu0 0
  %342 = vmatpush1.bf16.msra.mxu0 0
  %343 = vmatprep.subr.bf16.mxu0 0
  %344 = vmatpush1.bf16.msra.mxu0 0
  %345 = vmatprep.subr.bf16.mxu0 0
  %346 = vmatpush1.bf16.msra.mxu0 0
  %347 = vmatprep.subr.bf16.mxu0 0
  %348 = vmatpush1.bf16.msra.mxu0 0
  %349 = vmatprep.subr.bf16.mxu0 0
  %350 = vmatpush1.bf16.msra.mxu0 0
  %351 = vmatprep.subr.bf16.mxu0 0
  %352 = vmatpush1.bf16.msra.mxu0 0
  %353 = vmatprep.subr.bf16.mxu0 0
  %354 = vmatpush1.bf16.msra.mxu0 0
  %355 = vmatprep.subr.bf16.mxu0 0
  %356 = vmatpush1.bf16.msra.mxu0 0
  %357 = vmatprep.subr.bf16.mxu0 0
  %358 = vmatpush1.bf16.msra.mxu0 0
  %359 = vmatprep.subr.bf16.mxu0 0
  %360 = vmatpush1.bf16.msra.mxu0 0
  %361 = vmatprep.subr.bf16.mxu0 0
  %362 = vmatpush1.bf16.msra.mxu0 0
  %363 = vmatprep.subr.bf16.mxu0 0
  %364 = vmatpush1.bf16.msra.mxu0 0
  %365 = vmatprep.subr.bf16.mxu0 0
  %366 = vmatpush1.bf16.msra.mxu0 0
  %367 = vmatprep.subr.bf16.mxu0 0
  %368 = vmatpush1.bf16.msra.mxu0 0
  %369 = vmatprep.mubr.bf16.mxu0 0
  %370 = vmatmul.mubr.bf16.gmra.mrb[0].mxu0 %v335
  %v371 = vpop.f32.mrb[0].mxu0
  %v372 = vadd.f32 0.0, %v371
  %v373 = vpop.f32.mrb[0].mxu0
  %v374 = vpop.f32.mrb[0].mxu0
  %v375 = vadd.f32 0.0, %v374
  %v376 = vpop.f32.mrb[0].mxu0
  %377 = vdwg.mxu0
  %378 = vrot.lane.b32.xlu0 %v252, 112
  %v379 = vpop.permute.xlu0 %378
  %380 = vrot.lane.b32.xlu0 %v252, 80
  %v381 = vpop.permute.xlu0 %380
  %v383 = vsel %vm256, %v379, 0
  %v386 = vsel %vm256, %v381, 0
  %388 = vmatprep.subr.bf16.mxu0 0
  %389 = vmatpush1.bf16.xpose.msra.mxu0 %v386
  %390 = vmatprep.subr.bf16.mxu0 0
  %391 = vmatpush1.bf16.xpose.msra.mxu0 0
  %392 = vmatprep.subr.bf16.mxu0 0
  %393 = vmatpush1.bf16.xpose.msra.mxu0 0
  %394 = vmatprep.subr.bf16.mxu0 0
  %395 = vmatpush1.bf16.xpose.msra.mxu0 0
  %396 = vmatprep.subr.bf16.mxu0 0
  %397 = vmatpush1.bf16.xpose.msra.mxu0 0
  %398 = vmatprep.subr.bf16.mxu0 0
  %399 = vmatpush1.bf16.xpose.msra.mxu0 0
  %400 = vmatprep.subr.bf16.mxu0 0
  %401 = vmatpush1.bf16.xpose.msra.mxu0 0
  %402 = vmatprep.subr.bf16.mxu0 0
  %403 = vmatpush1.bf16.xpose.msra.mxu0 0
  %404 = vmatprep.subr.bf16.mxu0 0
  %405 = vmatpush1.bf16.xpose.msra.mxu0 0
  %406 = vmatprep.subr.bf16.mxu0 0
  %407 = vmatpush1.bf16.xpose.msra.mxu0 0
  %408 = vmatprep.subr.bf16.mxu0 0
  %409 = vmatpush1.bf16.xpose.msra.mxu0 0
  %410 = vmatprep.subr.bf16.mxu0 0
  %411 = vmatpush1.bf16.xpose.msra.mxu0 0
  %412 = vmatprep.subr.bf16.mxu0 0
  %413 = vmatpush1.bf16.xpose.msra.mxu0 0
  %414 = vmatprep.subr.bf16.mxu0 0
  %415 = vmatpush1.bf16.xpose.msra.mxu0 0
  %416 = vmatprep.subr.bf16.mxu0 0
  %417 = vmatpush1.bf16.xpose.msra.mxu0 0
  %418 = vmatprep.subr.bf16.mxu0 0
  %419 = vmatpush1.bf16.xpose.msra.mxu0 0
  %420 = vmatprep.mubr.bf16.mxu0 0
  %421 = vmatmul.mubr.bf16.gmra.mrb[0].mxu0 %v383
  %v422 = vpop.f32.mrb[0].mxu0
  %v423 = vadd.f32 0.0, %v422
  %v424 = vpop.f32.mrb[0].mxu0
  %v425 = vpop.f32.mrb[0].mxu0
  %v426 = vadd.f32 0.0, %v425
  %v427 = vpop.f32.mrb[0].mxu0
  %428 = vdwg.mxu0
  %v429 = vmul.f32 %v423, 0.25
  %v430 = vmul.f32 %v426, 0.25
  %v431 = vadd.f32 %v429, %v184
  %v432 = vadd.f32 %v430, %v185
  %v433 = vsel %vm256, %v431, -inf
  %434 = vmax.xlane.f32.xlu0 %v433
  %v435 = vpop.xlane.xlu0 %434
  %v436 = vsel %vm256, %v432, -inf
  %437 = vmax.xlane.f32.xlu0 %v436
  %v438 = vpop.xlane.xlu0 %437
  %v439 = vsub.f32 %v431, %v435
  %v440 = vsub.f32 %v432, %v438
  %v441 = vmul.f32 %v439, 1.442695
  %v442 = vpow.pop %v441
  %v443 = vmul.f32 %v440, 1.442695
  %v444 = vpow.pop %v443
  %v445 = vsel %vm256, %v442, 0.0
  %446 = vadd.xlane.f32.xlu0 %v445
  %v447 = vpop.xlane.xlu0 %446
  %v448 = vsel %vm256, %v444, 0.0
  %449 = vadd.xlane.f32.xlu0 %v448
  %v450 = vpop.xlane.xlu0 %449
  %v451 = vrcp.pop %v447
  %v452 = vrcp.pop %v450
  %v453 = vmul.f32 %v442, %v451
  %v454 = vmul.f32 %v444, %v452
  %v455 = vpack.c.bf16 %v454, %v453
  %456 = vrot.lane.b32.xlu0 %v252, 48
  %v457 = vpop.permute.xlu0 %456
  %v460 = vsel %vm256, %v455, 0
  %462 = vmatprep.subr.bf16.mxu0 0
  %463 = vmatpush1.bf16.msra.mxu0 %v457
  %464 = vmatprep.subr.bf16.mxu0 0
  %465 = vmatpush1.bf16.msra.mxu0 0
  %466 = vmatprep.subr.bf16.mxu0 0
  %467 = vmatpush1.bf16.msra.mxu0 0
  %468 = vmatprep.subr.bf16.mxu0 0
  %469 = vmatpush1.bf16.msra.mxu0 0
  %470 = vmatprep.subr.bf16.mxu0 0
  %471 = vmatpush1.bf16.msra.mxu0 0
  %472 = vmatprep.subr.bf16.mxu0 0
  %473 = vmatpush1.bf16.msra.mxu0 0
  %474 = vmatprep.subr.bf16.mxu0 0
  %475 = vmatpush1.bf16.msra.mxu0 0
  %476 = vmatprep.subr.bf16.mxu0 0
  %477 = vmatpush1.bf16.msra.mxu0 0
  %478 = vmatprep.subr.bf16.mxu0 0
  %479 = vmatpush1.bf16.msra.mxu0 0
  %480 = vmatprep.subr.bf16.mxu0 0
  %481 = vmatpush1.bf16.msra.mxu0 0
  %482 = vmatprep.subr.bf16.mxu0 0
  %483 = vmatpush1.bf16.msra.mxu0 0
  %484 = vmatprep.subr.bf16.mxu0 0
  %485 = vmatpush1.bf16.msra.mxu0 0
  %486 = vmatprep.subr.bf16.mxu0 0
  %487 = vmatpush1.bf16.msra.mxu0 0
  %488 = vmatprep.subr.bf16.mxu0 0
  %489 = vmatpush1.bf16.msra.mxu0 0
  %490 = vmatprep.subr.bf16.mxu0 0
  %491 = vmatpush1.bf16.msra.mxu0 0
  %492 = vmatprep.subr.bf16.mxu0 0
  %493 = vmatpush1.bf16.msra.mxu0 0
  %494 = vmatprep.mubr.bf16.mxu0 0
  %495 = vmatmul.mubr.bf16.gmra.mrb[0].mxu0 %v460
  %v496 = vpop.f32.mrb[0].mxu0
  %v497 = vadd.f32 0.0, %v496
  %v498 = vpop.f32.mrb[0].mxu0
  %v499 = vpop.f32.mrb[0].mxu0
  %v500 = vadd.f32 0.0, %v499
  %v501 = vpop.f32.mrb[0].mxu0
  %502 = vdwg.mxu0
  %505 = vrot.lane.b32.xlu0 %v497, 16
  %v506 = vpop.permute.xlu0 %505
  %507 = vrot.lane.b32.xlu0 %v500, 16
  %v508 = vpop.permute.xlu0 %507
  %v511 = vsel %vm256, %v372, %v506
  %v512 = vsel %vm256, %v375, %v508
  %v513 = vpack.c.bf16 %v512, %v511
  %v514 = vld [vmem:[%s3 + $0x40] sm:$0xf]
  %v515 = vld [vmem:[%s3 + $0x44] sm:$0xf]
  %v516 = vld [vmem:[%s3 + $0x48] sm:$0xf]
  %v517 = vld [vmem:[%s3 + $0x4c] sm:$0xf]
  %v518 = vld [vmem:[%s6 + $0x3] sm:$0x1]
  %v519 = vlaneseq
  %v520 = vshrl.u32 %v519, 7
  %v521 = vsub.s32 0, %v520
  %v522 = vrot.slane %v518, %v521
  %v527 = vunpack.c.l.b16 %v514
  %v528 = vunpack.c.l.b16 %v515
  %v529 = vunpack.c.l.b16 %v516
  %v530 = vunpack.c.l.b16 %v517
  %v531 = vpack.c.b16 %v528, %v527
  %v532 = vpack.c.b16 %v530, %v529
  %v536 = vsel %vm144, %v513, 0
  %538 = vmatprep.subr.bf16.mxu0 0
  %539 = vmatpush1.bf16.msra.mxu0 %v531
  %540 = vmatprep.subr.bf16.mxu0 0
  %541 = vmatpush1.bf16.msra.mxu0 %v532
  %542 = vmatprep.subr.bf16.mxu0 0
  %543 = vmatpush1.bf16.msra.mxu0 0
  %544 = vmatprep.subr.bf16.mxu0 0
  %545 = vmatpush1.bf16.msra.mxu0 0
  %546 = vmatprep.subr.bf16.mxu0 0
  %547 = vmatpush1.bf16.msra.mxu0 0
  %548 = vmatprep.subr.bf16.mxu0 0
  %549 = vmatpush1.bf16.msra.mxu0 0
  %550 = vmatprep.subr.bf16.mxu0 0
  %551 = vmatpush1.bf16.msra.mxu0 0
  %552 = vmatprep.subr.bf16.mxu0 0
  %553 = vmatpush1.bf16.msra.mxu0 0
  %554 = vmatprep.subr.bf16.mxu0 0
  %555 = vmatpush1.bf16.msra.mxu0 0
  %556 = vmatprep.subr.bf16.mxu0 0
  %557 = vmatpush1.bf16.msra.mxu0 0
  %558 = vmatprep.subr.bf16.mxu0 0
  %559 = vmatpush1.bf16.msra.mxu0 0
  %560 = vmatprep.subr.bf16.mxu0 0
  %561 = vmatpush1.bf16.msra.mxu0 0
  %562 = vmatprep.subr.bf16.mxu0 0
  %563 = vmatpush1.bf16.msra.mxu0 0
  %564 = vmatprep.subr.bf16.mxu0 0
  %565 = vmatpush1.bf16.msra.mxu0 0
  %566 = vmatprep.subr.bf16.mxu0 0
  %567 = vmatpush1.bf16.msra.mxu0 0
  %568 = vmatprep.subr.bf16.mxu0 0
  %569 = vmatpush1.bf16.msra.mxu0 0
  %570 = vmatprep.mubr.bf16.mxu0 0
  %571 = vmatmul.mubr.bf16.gmra.mrb[0].mxu0 %v536
  %v572 = vpop.f32.mrb[0].mxu0
  %v573 = vadd.f32 %v522, %v572
  %v574 = vpop.f32.mrb[0].mxu0
  %v575 = vpop.f32.mrb[0].mxu0
  %v576 = vadd.f32 %v522, %v575
  %v577 = vpop.f32.mrb[0].mxu0
  %578 = vdwg.mxu0
  %v579 = vadd.f32 %v573, %v182
  %v580 = vadd.f32 %v576, %v183
  %v581 = vld [vmem:[%s6 + $0x4] sm:$0x1]
  %v582 = vld [vmem:[%s6 + $0x5] sm:$0x1]
  %v583 = vsel %vm144, %v579, 0.0
  %584 = vadd.xlane.f32.xlu0 %v583
  %v585 = vpop.xlane.xlu0 %584
  %v586 = vsel %vm144, %v580, 0.0
  %587 = vadd.xlane.f32.xlu0 %v586
  %v588 = vpop.xlane.xlu0 %587
  %v589 = vmul.f32 %v585, %v151
  %v590 = vmul.f32 %v588, %v151
  %v591 = vsub.f32 %v579, %v589
  %v592 = vsub.f32 %v580, %v590
  %v593 = vmul.f32 %v591, %v591
  %v594 = vmul.f32 %v592, %v592
  %v595 = vsel %vm144, %v593, 0.0
  %596 = vadd.xlane.f32.xlu0 %v595
  %v597 = vpop.xlane.xlu0 %596
  %v598 = vsel %vm144, %v594, 0.0
  %599 = vadd.xlane.f32.xlu0 %v598
  %v600 = vpop.xlane.xlu0 %599
  %v601 = vmul.f32 %v597, %v151
  %v602 = vmul.f32 %v600, %v151
  %v603 = vadd.f32 %v601, 1e-12
  %v604 = vadd.f32 %v602, 1e-12
  %v605 = vrsqrt.pop %v603
  %v606 = vrsqrt.pop %v604
  %v607 = vmul.f32 %v591, %v605
  %v608 = vmul.f32 %v592, %v606
  %v609 = vlaneseq
  %v610 = vshrl.u32 %v609, 7
  %v611 = vsub.s32 0, %v610
  %v612 = vrot.slane %v581, %v611
  %v613 = vmul.f32 %v607, %v612
  %v614 = vmul.f32 %v608, %v612
  %v615 = vlaneseq
  %v616 = vshrl.u32 %v615, 7
  %v617 = vsub.s32 0, %v616
  %v618 = vrot.slane %v582, %v617
  %v619 = vadd.f32 %v613, %v618
  %v620 = vadd.f32 %v614, %v618
  %v621 = vpack.c.bf16 %v620, %v619
  %v622 = vld [vmem:[%s5] sm:$0xf]
  %v623 = vld [vmem:[%s5 + $0x4] sm:$0xf]
  %v624 = vld [vmem:[%s5 + $0x8] sm:$0xf]
  %v625 = vld [vmem:[%s5 + $0xc] sm:$0xf]
  %v626 = vld [vmem:[%s6 + $0x6] sm:$0x1]
  %v627 = vlaneseq
  %v628 = vshrl.u32 %v627, 7
  %v629 = vsub.s32 0, %v628
  %v630 = vrot.slane %v626, %v629
  %v635 = vunpack.c.l.b16 %v622
  %v636 = vunpack.c.l.b16 %v623
  %v637 = vunpack.c.l.b16 %v624
  %v638 = vunpack.c.l.b16 %v625
  %v639 = vpack.c.b16 %v636, %v635
  %v640 = vpack.c.b16 %v638, %v637
  %v644 = vsel %vm144, %v621, 0
  %646 = vmatprep.subr.bf16.mxu0 0
  %647 = vmatpush1.bf16.msra.mxu0 %v639
  %648 = vmatprep.subr.bf16.mxu0 0
  %649 = vmatpush1.bf16.msra.mxu0 %v640
  %650 = vmatprep.subr.bf16.mxu0 0
  %651 = vmatpush1.bf16.msra.mxu0 0
  %652 = vmatprep.subr.bf16.mxu0 0
  %653 = vmatpush1.bf16.msra.mxu0 0
  %654 = vmatprep.subr.bf16.mxu0 0
  %655 = vmatpush1.bf16.msra.mxu0 0
  %656 = vmatprep.subr.bf16.mxu0 0
  %657 = vmatpush1.bf16.msra.mxu0 0
  %658 = vmatprep.subr.bf16.mxu0 0
  %659 = vmatpush1.bf16.msra.mxu0 0
  %660 = vmatprep.subr.bf16.mxu0 0
  %661 = vmatpush1.bf16.msra.mxu0 0
  %662 = vmatprep.subr.bf16.mxu0 0
  %663 = vmatpush1.bf16.msra.mxu0 0
  %664 = vmatprep.subr.bf16.mxu0 0
  %665 = vmatpush1.bf16.msra.mxu0 0
  %666 = vmatprep.subr.bf16.mxu0 0
  %667 = vmatpush1.bf16.msra.mxu0 0
  %668 = vmatprep.subr.bf16.mxu0 0
  %669 = vmatpush1.bf16.msra.mxu0 0
  %670 = vmatprep.subr.bf16.mxu0 0
  %671 = vmatpush1.bf16.msra.mxu0 0
  %672 = vmatprep.subr.bf16.mxu0 0
  %673 = vmatpush1.bf16.msra.mxu0 0
  %674 = vmatprep.subr.bf16.mxu0 0
  %675 = vmatpush1.bf16.msra.mxu0 0
  %676 = vmatprep.subr.bf16.mxu0 0
  %677 = vmatpush1.bf16.msra.mxu0 0
  %678 = vmatprep.mubr.bf16.mxu0 0
  %679 = vmatmul.mubr.bf16.gmra.mrb[0].mxu0 %v644
  %v680 = vpop.f32.mrb[0].mxu0
  %v681 = vadd.f32 %v630, %v680
  %v682 = vpop.f32.mrb[0].mxu0
  %v683 = vpop.f32.mrb[0].mxu0
  %v684 = vadd.f32 %v630, %v683
  %v685 = vpop.f32.mrb[0].mxu0
  %686 = vdwg.mxu0
  %v687 = vmul.f32 %v681, 0.5
  %v688 = vmul.f32 %v684, 0.5
  %v689 = vmul.f32 %v681, 0.044715
  %v690 = vmul.f32 %v684, 0.044715
  %v691 = vmul.f32 %v689, %v681
  %v692 = vmul.f32 %v690, %v684
  %v693 = vmul.f32 %v691, %v681
  %v694 = vmul.f32 %v692, %v684
  %v695 = vadd.f32 %v681, %v693
  %v696 = vadd.f32 %v684, %v694
  %v697 = vmul.f32 %v695, 0.7978846
  %v698 = vmul.f32 %v696, 0.7978846
  %v699 = vtanh.pop %v697
  %v700 = vtanh.pop %v698
  %v701 = vadd.f32 %v699, 1.0
  %v702 = vadd.f32 %v700, 1.0
  %v703 = vmul.f32 %v687, %v701
  %v704 = vmul.f32 %v688, %v702
  %v705 = vpack.c.bf16 %v704, %v703
  %v706 = vld [vmem:[%s3 + $0x60] sm:$0xf]
  %v707 = vld [vmem:[%s3 + $0x64] sm:$0xf]
  %v708 = vld [vmem:[%s3 + $0x68] sm:$0xf]
  %v709 = vld [vmem:[%s3 + $0x6c] sm:$0xf]
  %v710 = vld [vmem:[%s3 + $0x70] sm:$0xf]
  %v711 = vld [vmem:[%s3 + $0x74] sm:$0xf]
  %v712 = vld [vmem:[%s3 + $0x78] sm:$0xf]
  %v713 = vld [vmem:[%s3 + $0x7c] sm:$0xf]
  %v714 = vld [vmem:[%s6 + $0x7] sm:$0x1]
  %v715 = vlaneseq
  %v716 = vshrl.u32 %v715, 7
  %v717 = vsub.s32 0, %v716
  %v718 = vrot.slane %v714, %v717
  %v727 = vunpack.c.l.b16 %v706
  %v728 = vunpack.c.l.b16 %v707
  %v729 = vunpack.c.l.b16 %v708
  %v730 = vunpack.c.l.b16 %v709
  %v731 = vunpack.c.l.b16 %v710
  %v732 = vunpack.c.l.b16 %v711
  %v733 = vunpack.c.l.b16 %v712
  %v734 = vunpack.c.l.b16 %v713
  %v735 = vpack.c.b16 %v728, %v727
  %v736 = vpack.c.b16 %v730, %v729
  %v737 = vpack.c.b16 %v732, %v731
  %v738 = vpack.c.b16 %v734, %v733
  %vm743 = vcmask 523264
  %v745 = vsel %vm743, %v705, 0
  %747 = vmatprep.subr.bf16.mxu0 0
  %748 = vmatpush1.bf16.msra.mxu0 %v735
  %749 = vmatprep.subr.bf16.mxu0 0
  %750 = vmatpush1.bf16.msra.mxu0 %v736
  %751 = vmatprep.subr.bf16.mxu0 0
  %752 = vmatpush1.bf16.msra.mxu0 %v737
  %753 = vmatprep.subr.bf16.mxu0 0
  %754 = vmatpush1.bf16.msra.mxu0 %v738
  %755 = vmatprep.subr.bf16.mxu0 0
  %756 = vmatpush1.bf16.msra.mxu0 0
  %757 = vmatprep.subr.bf16.mxu0 0
  %758 = vmatpush1.bf16.msra.mxu0 0
  %759 = vmatprep.subr.bf16.mxu0 0
  %760 = vmatpush1.bf16.msra.mxu0 0
  %761 = vmatprep.subr.bf16.mxu0 0
  %762 = vmatpush1.bf16.msra.mxu0 0
  %763 = vmatprep.subr.bf16.mxu0 0
  %764 = vmatpush1.bf16.msra.mxu0 0
  %765 = vmatprep.subr.bf16.mxu0 0
  %766 = vmatpush1.bf16.msra.mxu0 0
  %767 = vmatprep.subr.bf16.mxu0 0
  %768 = vmatpush1.bf16.msra.mxu0 0
  %769 = vmatprep.subr.bf16.mxu0 0
  %770 = vmatpush1.bf16.msra.mxu0 0
  %771 = vmatprep.subr.bf16.mxu0 0
  %772 = vmatpush1.bf16.msra.mxu0 0
  %773 = vmatprep.subr.bf16.mxu0 0
  %774 = vmatpush1.bf16.msra.mxu0 0
  %775 = vmatprep.subr.bf16.mxu0 0
  %776 = vmatpush1.bf16.msra.mxu0 0
  %777 = vmatprep.subr.bf16.mxu0 0
  %778 = vmatpush1.bf16.msra.mxu0 0
  %779 = vmatprep.mubr.bf16.mxu0 0
  %780 = vmatmul.mubr.bf16.gmra.mrb[0].mxu0 %v745
  %v781 = vpop.f32.mrb[0].mxu0
  %v782 = vadd.f32 %v718, %v781
  %v783 = vpop.f32.mrb[0].mxu0
  %v784 = vpop.f32.mrb[0].mxu0
  %v785 = vadd.f32 %v718, %v784
  %v786 = vpop.f32.mrb[0].mxu0
  %787 = vdwg.mxu0
  %v788 = vadd.f32 %v782, %v619
  %v789 = vadd.f32 %v785, %v620
  %v790 = vld [vmem:[%s6 + $0x8] sm:$0x1]
  %v791 = vld [vmem:[%s6 + $0x9] sm:$0x1]
  %v792 = vsel %vm144, %v788, 0.0
  %793 = vadd.xlane.f32.xlu0 %v792
  %v794 = vpop.xlane.xlu0 %793
  %v795 = vsel %vm144, %v789, 0.0
  %796 = vadd.xlane.f32.xlu0 %v795
  %v797 = vpop.xlane.xlu0 %796
  %v798 = vmul.f32 %v794, %v151
  %v799 = vmul.f32 %v797, %v151
  %v800 = vsub.f32 %v788, %v798
  %v801 = vsub.f32 %v789, %v799
  %v802 = vmul.f32 %v800, %v800
  %v803 = vmul.f32 %v801, %v801
  %v804 = vsel %vm144, %v802, 0.0
  %805 = vadd.xlane.f32.xlu0 %v804
  %v806 = vpop.xlane.xlu0 %805
  %v807 = vsel %vm144, %v803, 0.0
  %808 = vadd.xlane.f32.xlu0 %v807
  %v809 = vpop.xlane.xlu0 %808
  %v810 = vmul.f32 %v806, %v151
  %v811 = vmul.f32 %v809, %v151
  %v812 = vadd.f32 %v810, 1e-12
  %v813 = vadd.f32 %v811, 1e-12
  %v814 = vrsqrt.pop %v812
  %v815 = vrsqrt.pop %v813
  %v816 = vmul.f32 %v800, %v814
  %v817 = vmul.f32 %v801, %v815
  %v818 = vlaneseq
  %v819 = vshrl.u32 %v818, 7
  %v820 = vsub.s32 0, %v819
  %v821 = vrot.slane %v790, %v820
  %v822 = vmul.f32 %v816, %v821
  %v823 = vmul.f32 %v817, %v821
  %v824 = vlaneseq
  %v825 = vshrl.u32 %v824, 7
  %v826 = vsub.s32 0, %v825
  %v827 = vrot.slane %v791, %v826
  %v828 = vadd.f32 %v822, %v827
  %v829 = vadd.f32 %v823, %v827
  %v830 = vpack.c.bf16 %v829, %v828
  %v831 = vld [vmem:[%s4 + $0x10] sm:$0xf]
  %v832 = vld [vmem:[%s4 + $0x14] sm:$0xf]
  %v833 = vld [vmem:[%s4 + $0x18] sm:$0xf]
  %v834 = vld [vmem:[%s4 + $0x1c] sm:$0xf]
  %v835 = vld [vmem:[%s6 + $0xa] sm:$0x1]
  %v836 = vlaneseq
  %v837 = vshrl.u32 %v836, 7
  %v838 = vsub.s32 0, %v837
  %v839 = vrot.slane %v835, %v838
  %v844 = vunpack.c.l.b16 %v831
  %v845 = vunpack.c.l.b16 %v832
  %v846 = vunpack.c.l.b16 %v833
  %v847 = vunpack.c.l.b16 %v834
  %v848 = vpack.c.b16 %v845, %v844
  %v849 = vpack.c.b16 %v847, %v846
  %v853 = vsel %vm144, %v830, 0
  %855 = vmatprep.subr.bf16.mxu0 0
  %856 = vmatpush1.bf16.msra.mxu0 %v848
  %857 = vmatprep.subr.bf16.mxu0 0
  %858 = vmatpush1.bf16.msra.mxu0 %v849
  %859 = vmatprep.subr.bf16.mxu0 0
  %860 = vmatpush1.bf16.msra.mxu0 0
  %861 = vmatprep.subr.bf16.mxu0 0
  %862 = vmatpush1.bf16.msra.mxu0 0
  %863 = vmatprep.subr.bf16.mxu0 0
  %864 = vmatpush1.bf16.msra.mxu0 0
  %865 = vmatprep.subr.bf16.mxu0 0
  %866 = vmatpush1.bf16.msra.mxu0 0
  %867 = vmatprep.subr.bf16.mxu0 0
  %868 = vmatpush1.bf16.msra.mxu0 0
  %869 = vmatprep.subr.bf16.mxu0 0
  %870 = vmatpush1.bf16.msra.mxu0 0
  %871 = vmatprep.subr.bf16.mxu0 0
  %872 = vmatpush1.bf16.msra.mxu0 0
  %873 = vmatprep.subr.bf16.mxu0 0
  %874 = vmatpush1.bf16.msra.mxu0 0
  %875 = vmatprep.subr.bf16.mxu0 0
  %876 = vmatpush1.bf16.msra.mxu0 0
  %877 = vmatprep.subr.bf16.mxu0 0
  %878 = vmatpush1.bf16.msra.mxu0 0
  %879 = vmatprep.subr.bf16.mxu0 0
  %880 = vmatpush1.bf16.msra.mxu0 0
  %881 = vmatprep.subr.bf16.mxu0 0
  %882 = vmatpush1.bf16.msra.mxu0 0
  %883 = vmatprep.subr.bf16.mxu0 0
  %884 = vmatpush1.bf16.msra.mxu0 0
  %885 = vmatprep.subr.bf16.mxu0 0
  %886 = vmatpush1.bf16.msra.mxu0 0
  %887 = vmatprep.mubr.bf16.mxu0 0
  %888 = vmatmul.mubr.bf16.gmra.mrb[0].mxu0 %v853
  %v889 = vpop.f32.mrb[0].mxu0
  %v890 = vadd.f32 %v839, %v889
  %v891 = vpop.f32.mrb[0].mxu0
  %v892 = vpop.f32.mrb[0].mxu0
  %v893 = vadd.f32 %v839, %v892
  %v894 = vpop.f32.mrb[0].mxu0
  %895 = vdwg.mxu0
  %v896 = vpack.c.bf16 %v893, %v890
  %898 = vrot.lane.b32.xlu0 %v896, 96
  %v899 = vpop.permute.xlu0 %898
  %v901 = vsel %vm256, %v896, 0
  %v904 = vsel %vm256, %v899, 0
  %906 = vmatprep.subr.bf16.mxu0 0
  %907 = vmatpush1.bf16.xpose.msra.mxu0 %v904
  %908 = vmatprep.subr.bf16.mxu0 0
  %909 = vmatpush1.bf16.xpose.msra.mxu0 0
  %910 = vmatprep.subr.bf16.mxu0 0
  %911 = vmatpush1.bf16.xpose.msra.mxu0 0
  %912 = vmatprep.subr.bf16.mxu0 0
  %913 = vmatpush1.bf16.xpose.msra.mxu0 0
  %914 = vmatprep.subr.bf16.mxu0 0
  %915 = vmatpush1.bf16.xpose.msra.mxu0 0
  %916 = vmatprep.subr.bf16.mxu0 0
  %917 = vmatpush1.bf16.xpose.msra.mxu0 0
  %918 = vmatprep.subr.bf16.mxu0 0
  %919 = vmatpush1.bf16.xpose.msra.mxu0 0
  %920 = vmatprep.subr.bf16.mxu0 0
  %921 = vmatpush1.bf16.xpose.msra.mxu0 0
  %922 = vmatprep.subr.bf16.mxu0 0
  %923 = vmatpush1.bf16.xpose.msra.mxu0 0
  %924 = vmatprep.subr.bf16.mxu0 0
  %925 = vmatpush1.bf16.xpose.msra.mxu0 0
  %926 = vmatprep.subr.bf16.mxu0 0
  %927 = vmatpush1.bf16.xpose.msra.mxu0 0
  %928 = vmatprep.subr.bf16.mxu0 0
  %929 = vmatpush1.bf16.xpose.msra.mxu0 0
  %930 = vmatprep.subr.bf16.mxu0 0
  %931 = vmatpush1.bf16.xpose.msra.mxu0 0
  %932 = vmatprep.subr.bf16.mxu0 0
  %933 = vmatpush1.bf16.xpose.msra.mxu0 0
  %934 = vmatprep.subr.bf16.mxu0 0
  %935 = vmatpush1.bf16.xpose.msra.mxu0 0
  %936 = vmatprep.subr.bf16.mxu0 0
  %937 = vmatpush1.bf16.xpose.msra.mxu0 0
  %938 = vmatprep.mubr.bf16.mxu0 0
  %939 = vmatmul.mubr.bf16.gmra.mrb[0].mxu0 %v901
  %v940 = vpop.f32.mrb[0].mxu0
  %v941 = vadd.f32 0.0, %v940
  %v942 = vpop.f32.mrb[0].mxu0
  %v943 = vpop.f32.mrb[0].mxu0
  %v944 = vadd.f32 0.0, %v943
  %v945 = vpop.f32.mrb[0].mxu0
  %946 = vdwg.mxu0
  %v947 = vmul.f32 %v941, 0.25
  %v948 = vmul.f32 %v944, 0.25
  %v949 = vadd.f32 %v947, %v184
  %v950 = vadd.f32 %v948, %v185
  %v951 = vsel %vm256, %v949, -inf
  %952 = vmax.xlane.f32.xlu0 %v951
  %v953 = vpop.xlane.xlu0 %952
  %v954 = vsel %vm256, %v950, -inf
  %955 = vmax.xlane.f32.xlu0 %v954
  %v956 = vpop.xlane.xlu0 %955
  %v957 = vsub.f32 %v949, %v953
  %v958 = vsub.f32 %v950, %v956
  %v959 = vmul.f32 %v957, 1.442695
  %v960 = vpow.pop %v959
  %v961 = vmul.f32 %v958, 1.442695
  %v962 = vpow.pop %v961
  %v963 = vsel %vm256, %v960, 0.0
  %964 = vadd.xlane.f32.xlu0 %v963
  %v965 = vpop.xlane.xlu0 %964
  %v966 = vsel %vm256, %v962, 0.0
  %967 = vadd.xlane.f32.xlu0 %v966
  %v968 = vpop.xlane.xlu0 %967
  %v969 = vrcp.pop %v965
  %v970 = vrcp.pop %v968
  %v971 = vmul.f32 %v960, %v969
  %v972 = vmul.f32 %v962, %v970
  %v973 = vpack.c.bf16 %v972, %v971
  %974 = vrot.lane.b32.xlu0 %v896, 64
  %v975 = vpop.permute.xlu0 %974
  %v978 = vsel %vm256, %v973, 0
  %980 = vmatprep.subr.bf16.mxu0 0
  %981 = vmatpush1.bf16.msra.mxu0 %v975
  %982 = vmatprep.subr.bf16.mxu0 0
  %983 = vmatpush1.bf16.msra.mxu0 0
  %984 = vmatprep.subr.bf16.mxu0 0
  %985 = vmatpush1.bf16.msra.mxu0 0
  %986 = vmatprep.subr.bf16.mxu0 0
  %987 = vmatpush1.bf16.msra.mxu0 0
  %988 = vmatprep.subr.bf16.mxu0 0
  %989 = vmatpush1.bf16.msra.mxu0 0
  %990 = vmatprep.subr.bf16.mxu0 0
  %991 = vmatpush1.bf16.msra.mxu0 0
  %992 = vmatprep.subr.bf16.mxu0 0
  %993 = vmatpush1.bf16.msra.mxu0 0
  %994 = vmatprep.subr.bf16.mxu0 0
  %995 = vmatpush1.bf16.msra.mxu0 0
  %996 = vmatprep.subr.bf16.mxu0 0
  %997 = vmatpush1.bf16.msra.mxu0 0
  %998 = vmatprep.subr.bf16.mxu0 0
  %999 = vmatpush1.bf16.msra.mxu0 0
  %1000 = vmatprep.subr.bf16.mxu0 0
  %1001 = vmatpush1.bf16.msra.mxu0 0
  %1002 = vmatprep.subr.bf16.mxu0 0
  %1003 = vmatpush1.bf16.msra.mxu0 0
  %1004 = vmatprep.subr.bf16.mxu0 0
  %1005 = vmatpush1.bf16.msra.mxu0 0
  %1006 = vmatprep.subr.bf16.mxu0 0
  %1007 = vmatpush1.bf16.msra.mxu0 0
  %1008 = vmatprep.subr.bf16.mxu0 0
  %1009 = vmatpush1.bf16.msra.mxu0 0
  %1010 = vmatprep.subr.bf16.mxu0 0
  %1011 = vmatpush1.bf16.msra.mxu0 0
  %1012 = vmatprep.mubr.bf16.mxu0 0
  %1013 = vmatmul.mubr.bf16.gmra.mrb[0].mxu0 %v978
  %v1014 = vpop.f32.mrb[0].mxu0
  %v1015 = vadd.f32 0.0, %v1014
  %v1016 = vpop.f32.mrb[0].mxu0
  %v1017 = vpop.f32.mrb[0].mxu0
  %v1018 = vadd.f32 0.0, %v1017
  %v1019 = vpop.f32.mrb[0].mxu0
  %1020 = vdwg.mxu0
  %1021 = vrot.lane.b32.xlu0 %v896, 112
  %v1022 = vpop.permute.xlu0 %1021
  %1023 = vrot.lane.b32.xlu0 %v896, 80
  %v1024 = vpop.permute.xlu0 %1023
  %v1026 = vsel %vm256, %v1022, 0
  %v1029 = vsel %vm256, %v1024, 0
  %1031 = vmatprep.subr.bf16.mxu0 0
  %1032 = vmatpush1.bf16.xpose.msra.mxu0 %v1029
  %1033 = vmatprep.subr.bf16.mxu0 0
  %1034 = vmatpush1.bf16.xpose.msra.mxu0 0
  %1035 = vmatprep.subr.bf16.mxu0 0
  %1036 = vmatpush1.bf16.xpose.msra.mxu0 0
  %1037 = vmatprep.subr.bf16.mxu0 0
  %1038 = vmatpush1.bf16.xpose.msra.mxu0 0
  %1039 = vmatprep.subr.bf16.mxu0 0
  %1040 = vmatpush1.bf16.xpose.msra.mxu0 0
  %1041 = vmatprep.subr.bf16.mxu0 0
  %1042 = vmatpush1.bf16.xpose.msra.mxu0 0
  %1043 = vmatprep.subr.bf16.mxu0 0
  %1044 = vmatpush1.bf16.xpose.msra.mxu0 0
  %1045 = vmatprep.subr.bf16.mxu0 0
  %1046 = vmatpush1.bf16.xpose.msra.mxu0 0
  %1047 = vmatprep.subr.bf16.mxu0 0
  %1048 = vmatpush1.bf16.xpose.msra.mxu0 0
  %1049 = vmatprep.subr.bf16.mxu0 0
  %1050 = vmatpush1.bf16.xpose.msra.mxu0 0
  %1051 = vmatprep.subr.bf16.mxu0 0
  %1052 = vmatpush1.bf16.xpose.msra.mxu0 0
  %1053 = vmatprep.subr.bf16.mxu0 0
  %1054 = vmatpush1.bf16.xpose.msra.mxu0 0
  %1055 = vmatprep.subr.bf16.mxu0 0
  %1056 = vmatpush1.bf16.xpose.msra.mxu0 0
  %1057 = vmatprep.subr.bf16.mxu0 0
  %1058 = vmatpush1.bf16.xpose.msra.mxu0 0
  %1059 = vmatprep.subr.bf16.mxu0 0
  %1060 = vmatpush1.bf16.xpose.msra.mxu0 0
  %1061 = vmatprep.subr.bf16.mxu0 0
  %1062 = vmatpush1.bf16.xpose.msra.mxu0 0
  %1063 = vmatprep.mubr.bf16.mxu0 0
  %1064 = vmatmul.mubr.bf16.gmra.mrb[0].mxu0 %v1026
  %v1065 = vpop.f32.mrb[0].mxu0
  %v1066 = vadd.f32 0.0, %v1065
  %v1067 = vpop.f32.mrb[0].mxu0
  %v1068 = vpop.f32.mrb[0].mxu0
  %v1069 = vadd.f32 0.0, %v1068
  %v1070 = vpop.f32.mrb[0].mxu0
  %1071 = vdwg.mxu0
  %v1072 = vmul.f32 %v1066, 0.25
  %v1073 = vmul.f32 %v1069, 0.25
  %v1074 = vadd.f32 %v1072, %v184
  %v1075 = vadd.f32 %v1073, %v185
  %v1076 = vsel %vm256, %v1074, -inf
  %1077 = vmax.xlane.f32.xlu0 %v1076
  %v1078 = vpop.xlane.xlu0 %1077
  %v1079 = vsel %vm256, %v1075, -inf
  %1080 = vmax.xlane.f32.xlu0 %v1079
  %v1081 = vpop.xlane.xlu0 %1080
  %v1082 = vsub.f32 %v1074, %v1078
  %v1083 = vsub.f32 %v1075, %v1081
  %v1084 = vmul.f32 %v1082, 1.442695
  %v1085 = vpow.pop %v1084
  %v1086 = vmul.f32 %v1083, 1.442695
  %v1087 = vpow.pop %v1086
  %v1088 = vsel %vm256, %v1085, 0.0
  %1089 = vadd.xlane.f32.xlu0 %v1088
  %v1090 = vpop.xlane.xlu0 %1089
  %v1091 = vsel %vm256, %v1087, 0.0
  %1092 = vadd.xlane.f32.xlu0 %v1091
  %v1093 = vpop.xlane.xlu0 %1092
  %v1094 = vrcp.pop %v1090
  %v1095 = vrcp.pop %v1093
  %v1096 = vmul.f32 %v1085, %v1094
  %v1097 = vmul.f32 %v1087, %v1095
  %v1098 = vpack.c.bf16 %v1097, %v1096
  %1099 = vrot.lane.b32.xlu0 %v896, 48
  %v1100 = vpop.permute.xlu0 %1099
  %v1103 = vsel %vm256, %v1098, 0
  %1105 = vmatprep.subr.bf16.mxu0 0
  %1106 = vmatpush1.bf16.msra.mxu0 %v1100
  %1107 = vmatprep.subr.bf16.mxu0 0
  %1108 = vmatpush1.bf16.msra.mxu0 0
  %1109 = vmatprep.subr.bf16.mxu0 0
  %1110 = vmatpush1.bf16.msra.mxu0 0
  %1111 = vmatprep.subr.bf16.mxu0 0
  %1112 = vmatpush1.bf16.msra.mxu0 0
  %1113 = vmatprep.subr.bf16.mxu0 0
  %1114 = vmatpush1.bf16.msra.mxu0 0
  %1115 = vmatprep.subr.bf16.mxu0 0
  %1116 = vmatpush1.bf16.msra.mxu0 0
  %1117 = vmatprep.subr.bf16.mxu0 0
  %1118 = vmatpush1.bf16.msra.mxu0 0
  %1119 = vmatprep.subr.bf16.mxu0 0
  %1120 = vmatpush1.bf16.msra.mxu0 0
  %1121 = vmatprep.subr.bf16.mxu0 0
  %1122 = vmatpush1.bf16.msra.mxu0 0
  %1123 = vmatprep.subr.bf16.mxu0 0
  %1124 = vmatpush1.bf16.msra.mxu0 0
  %1125 = vmatprep.subr.bf16.mxu0 0
  %1126 = vmatpush1.bf16.msra.mxu0 0
  %1127 = vmatprep.subr.bf16.mxu0 0
  %1128 = vmatpush1.bf16.msra.mxu0 0
  %1129 = vmatprep.subr.bf16.mxu0 0
  %1130 = vmatpush1.bf16.msra.mxu0 0
  %1131 = vmatprep.subr.bf16.mxu0 0
  %1132 = vmatpush1.bf16.msra.mxu0 0
  %1133 = vmatprep.subr.bf16.mxu0 0
  %1134 = vmatpush1.bf16.msra.mxu0 0
  %1135 = vmatprep.subr.bf16.mxu0 0
  %1136 = vmatpush1.bf16.msra.mxu0 0
  %1137 = vmatprep.mubr.bf16.mxu0 0
  %1138 = vmatmul.mubr.bf16.gmra.mrb[0].mxu0 %v1103
  %v1139 = vpop.f32.mrb[0].mxu0
  %v1140 = vadd.f32 0.0, %v1139
  %v1141 = vpop.f32.mrb[0].mxu0
  %v1142 = vpop.f32.mrb[0].mxu0
  %v1143 = vadd.f32 0.0, %v1142
  %v1144 = vpop.f32.mrb[0].mxu0
  %1145 = vdwg.mxu0
  %1148 = vrot.lane.b32.xlu0 %v1140, 16
  %v1149 = vpop.permute.xlu0 %1148
  %1150 = vrot.lane.b32.xlu0 %v1143, 16
  %v1151 = vpop.permute.xlu0 %1150
  %v1154 = vsel %vm256, %v1015, %v1149
  %v1155 = vsel %vm256, %v1018, %v1151
  %v1156 = vpack.c.bf16 %v1155, %v1154
  %v1157 = vld [vmem:[%s3 + $0x50] sm:$0xf]
  %v1158 = vld [vmem:[%s3 + $0x54] sm:$0xf]
  %v1159 = vld [vmem:[%s3 + $0x58] sm:$0xf]
  %v1160 = vld [vmem:[%s3 + $0x5c] sm:$0xf]
  %v1161 = vld [vmem:[%s6 + $0xb] sm:$0x1]
  %v1162 = vlaneseq
  %v1163 = vshrl.u32 %v1162, 7
  %v1164 = vsub.s32 0, %v1163
  %v1165 = vrot.slane %v1161, %v1164
  %v1170 = vunpack.c.l.b16 %v1157
  %v1171 = vunpack.c.l.b16 %v1158
  %v1172 = vunpack.c.l.b16 %v1159
  %v1173 = vunpack.c.l.b16 %v1160
  %v1174 = vpack.c.b16 %v1171, %v1170
  %v1175 = vpack.c.b16 %v1173, %v1172
  %v1179 = vsel %vm144, %v1156, 0
  %1181 = vmatprep.subr.bf16.mxu0 0
  %1182 = vmatpush1.bf16.msra.mxu0 %v1174
  %1183 = vmatprep.subr.bf16.mxu0 0
  %1184 = vmatpush1.bf16.msra.mxu0 %v1175
  %1185 = vmatprep.subr.bf16.mxu0 0
  %1186 = vmatpush1.bf16.msra.mxu0 0
  %1187 = vmatprep.subr.bf16.mxu0 0
  %1188 = vmatpush1.bf16.msra.mxu0 0
  %1189 = vmatprep.subr.bf16.mxu0 0
  %1190 = vmatpush1.bf16.msra.mxu0 0
  %1191 = vmatprep.subr.bf16.mxu0 0
  %1192 = vmatpush1.bf16.msra.mxu0 0
  %1193 = vmatprep.subr.bf16.mxu0 0
  %1194 = vmatpush1.bf16.msra.mxu0 0
  %1195 = vmatprep.subr.bf16.mxu0 0
  %1196 = vmatpush1.bf16.msra.mxu0 0
  %1197 = vmatprep.subr.bf16.mxu0 0
  %1198 = vmatpush1.bf16.msra.mxu0 0
  %1199 = vmatprep.subr.bf16.mxu0 0
  %1200 = vmatpush1.bf16.msra.mxu0 0
  %1201 = vmatprep.subr.bf16.mxu0 0
  %1202 = vmatpush1.bf16.msra.mxu0 0
  %1203 = vmatprep.subr.bf16.mxu0 0
  %1204 = vmatpush1.bf16.msra.mxu0 0
  %1205 = vmatprep.subr.bf16.mxu0 0
  %1206 = vmatpush1.bf16.msra.mxu0 0
  %1207 = vmatprep.subr.bf16.mxu0 0
  %1208 = vmatpush1.bf16.msra.mxu0 0
  %1209 = vmatprep.subr.bf16.mxu0 0
  %1210 = vmatpush1.bf16.msra.mxu0 0
  %1211 = vmatprep.subr.bf16.mxu0 0
  %1212 = vmatpush1.bf16.msra.mxu0 0
  %1213 = vmatprep.mubr.bf16.mxu0 0
  %1214 = vmatmul.mubr.bf16.gmra.mrb[0].mxu0 %v1179
  %v1215 = vpop.f32.mrb[0].mxu0
  %v1216 = vadd.f32 %v1165, %v1215
  %v1217 = vpop.f32.mrb[0].mxu0
  %v1218 = vpop.f32.mrb[0].mxu0
  %v1219 = vadd.f32 %v1165, %v1218
  %v1220 = vpop.f32.mrb[0].mxu0
  %1221 = vdwg.mxu0
  %v1222 = vadd.f32 %v1216, %v828
  %v1223 = vadd.f32 %v1219, %v829
  %v1224 = vld [vmem:[%s6 + $0xc] sm:$0x1]
  %v1225 = vld [vmem:[%s6 + $0xd] sm:$0x1]
  %v1226 = vsel %vm144, %v1222, 0.0
  %1227 = vadd.xlane.f32.xlu0 %v1226
  %v1228 = vpop.xlane.xlu0 %1227
  %v1229 = vsel %vm144, %v1223, 0.0
  %1230 = vadd.xlane.f32.xlu0 %v1229
  %v1231 = vpop.xlane.xlu0 %1230
  %v1232 = vmul.f32 %v1228, %v151
  %v1233 = vmul.f32 %v1231, %v151
  %v1234 = vsub.f32 %v1222, %v1232
  %v1235 = vsub.f32 %v1223, %v1233
  %v1236 = vmul.f32 %v1234, %v1234
  %v1237 = vmul.f32 %v1235, %v1235
  %v1238 = vsel %vm144, %v1236, 0.0
  %1239 = vadd.xlane.f32.xlu0 %v1238
  %v1240 = vpop.xlane.xlu0 %1239
  %v1241 = vsel %vm144, %v1237, 0.0
  %1242 = vadd.xlane.f32.xlu0 %v1241
  %v1243 = vpop.xlane.xlu0 %1242
  %v1244 = vmul.f32 %v1240, %v151
  %v1245 = vmul.f32 %v1243, %v151
  %v1246 = vadd.f32 %v1244, 1e-12
  %v1247 = vadd.f32 %v1245, 1e-12
  %v1248 = vrsqrt.pop %v1246
  %v1249 = vrsqrt.pop %v1247
  %v1250 = vmul.f32 %v1234, %v1248
  %v1251 = vmul.f32 %v1235, %v1249
  %v1252 = vlaneseq
  %v1253 = vshrl.u32 %v1252, 7
  %v1254 = vsub.s32 0, %v1253
  %v1255 = vrot.slane %v1224, %v1254
  %v1256 = vmul.f32 %v1250, %v1255
  %v1257 = vmul.f32 %v1251, %v1255
  %v1258 = vlaneseq
  %v1259 = vshrl.u32 %v1258, 7
  %v1260 = vsub.s32 0, %v1259
  %v1261 = vrot.slane %v1225, %v1260
  %v1262 = vadd.f32 %v1256, %v1261
  %v1263 = vadd.f32 %v1257, %v1261
  %v1264 = vpack.c.bf16 %v1263, %v1262
  %v1265 = vld [vmem:[%s5 + $0x10] sm:$0xf]
  %v1266 = vld [vmem:[%s5 + $0x14] sm:$0xf]
  %v1267 = vld [vmem:[%s5 + $0x18] sm:$0xf]
  %v1268 = vld [vmem:[%s5 + $0x1c] sm:$0xf]
  %v1269 = vld [vmem:[%s6 + $0xe] sm:$0x1]
  %v1270 = vlaneseq
  %v1271 = vshrl.u32 %v1270, 7
  %v1272 = vsub.s32 0, %v1271
  %v1273 = vrot.slane %v1269, %v1272
  %v1278 = vunpack.c.l.b16 %v1265
  %v1279 = vunpack.c.l.b16 %v1266
  %v1280 = vunpack.c.l.b16 %v1267
  %v1281 = vunpack.c.l.b16 %v1268
  %v1282 = vpack.c.b16 %v1279, %v1278
  %v1283 = vpack.c.b16 %v1281, %v1280
  %v1287 = vsel %vm144, %v1264, 0
  %1289 = vmatprep.subr.bf16.mxu0 0
  %1290 = vmatpush1.bf16.msra.mxu0 %v1282
  %1291 = vmatprep.subr.bf16.mxu0 0
  %1292 = vmatpush1.bf16.msra.mxu0 %v1283
  %1293 = vmatprep.subr.bf16.mxu0 0
  %1294 = vmatpush1.bf16.msra.mxu0 0
  %1295 = vmatprep.subr.bf16.mxu0 0
  %1296 = vmatpush1.bf16.msra.mxu0 0
  %1297 = vmatprep.subr.bf16.mxu0 0
  %1298 = vmatpush1.bf16.msra.mxu0 0
  %1299 = vmatprep.subr.bf16.mxu0 0
  %1300 = vmatpush1.bf16.msra.mxu0 0
  %1301 = vmatprep.subr.bf16.mxu0 0
  %1302 = vmatpush1.bf16.msra.mxu0 0
  %1303 = vmatprep.subr.bf16.mxu0 0
  %1304 = vmatpush1.bf16.msra.mxu0 0
  %1305 = vmatprep.subr.bf16.mxu0 0
  %1306 = vmatpush1.bf16.msra.mxu0 0
  %1307 = vmatprep.subr.bf16.mxu0 0
  %1308 = vmatpush1.bf16.msra.mxu0 0
  %1309 = vmatprep.subr.bf16.mxu0 0
  %1310 = vmatpush1.bf16.msra.mxu0 0
  %1311 = vmatprep.subr.bf16.mxu0 0
  %1312 = vmatpush1.bf16.msra.mxu0 0
  %1313 = vmatprep.subr.bf16.mxu0 0
  %1314 = vmatpush1.bf16.msra.mxu0 0
  %1315 = vmatprep.subr.bf16.mxu0 0
  %1316 = vmatpush1.bf16.msra.mxu0 0
  %1317 = vmatprep.subr.bf16.mxu0 0
  %1318 = vmatpush1.bf16.msra.mxu0 0
  %1319 = vmatprep.subr.bf16.mxu0 0
  %1320 = vmatpush1.bf16.msra.mxu0 0
  %1321 = vmatprep.mubr.bf16.mxu0 0
  %1322 = vmatmul.mubr.bf16.gmra.mrb[0].mxu0 %v1287
  %v1323 = vpop.f32.mrb[0].mxu0
  %v1324 = vadd.f32 %v1273, %v1323
  %v1325 = vpop.f32.mrb[0].mxu0
  %v1326 = vpop.f32.mrb[0].mxu0
  %v1327 = vadd.f32 %v1273, %v1326
  %v1328 = vpop.f32.mrb[0].mxu0
  %1329 = vdwg.mxu0
  %v1330 = vmul.f32 %v1324, 0.5
  %v1331 = vmul.f32 %v1327, 0.5
  %v1332 = vmul.f32 %v1324, 0.044715
  %v1333 = vmul.f32 %v1327, 0.044715
  %v1334 = vmul.f32 %v1332, %v1324
  %v1335 = vmul.f32 %v1333, %v1327
  %v1336 = vmul.f32 %v1334, %v1324
  %v1337 = vmul.f32 %v1335, %v1327
  %v1338 = vadd.f32 %v1324, %v1336
  %v1339 = vadd.f32 %v1327, %v1337
  %v1340 = vmul.f32 %v1338, 0.7978846
  %v1341 = vmul.f32 %v1339, 0.7978846
  %v1342 = vtanh.pop %v1340
  %v1343 = vtanh.pop %v1341
  %v1344 = vadd.f32 %v1342, 1.0
  %v1345 = vadd.f32 %v1343, 1.0
  %v1346 = vmul.f32 %v1330, %v1344
  %v1347 = vmul.f32 %v1331, %v1345
  %v1348 = vpack.c.bf16 %v1347, %v1346
  %v1349 = vld [vmem:[%s3 + $0x80] sm:$0xf]
  %v1350 = vld [vmem:[%s3 + $0x84] sm:$0xf]
  %v1351 = vld [vmem:[%s3 + $0x88] sm:$0xf]
  %v1352 = vld [vmem:[%s3 + $0x8c] sm:$0xf]
  %v1353 = vld [vmem:[%s3 + $0x90] sm:$0xf]
  %v1354 = vld [vmem:[%s3 + $0x94] sm:$0xf]
  %v1355 = vld [vmem:[%s3 + $0x98] sm:$0xf]
  %v1356 = vld [vmem:[%s3 + $0x9c] sm:$0xf]
  %v1357 = vld [vmem:[%s6 + $0xf] sm:$0x1]
  %v1358 = vlaneseq
  %v1359 = vshrl.u32 %v1358, 7
  %v1360 = vsub.s32 0, %v1359
  %v1361 = vrot.slane %v1357, %v1360
  %v1370 = vunpack.c.l.b16 %v1349
  %v1371 = vunpack.c.l.b16 %v1350
  %v1372 = vunpack.c.l.b16 %v1351
  %v1373 = vunpack.c.l.b16 %v1352
  %v1374 = vunpack.c.l.b16 %v1353
  %v1375 = vunpack.c.l.b16 %v1354
  %v1376 = vunpack.c.l.b16 %v1355
  %v1377 = vunpack.c.l.b16 %v1356
  %v1378 = vpack.c.b16 %v1371, %v1370
  %v1379 = vpack.c.b16 %v1373, %v1372
  %v1380 = vpack.c.b16 %v1375, %v1374
  %v1381 = vpack.c.b16 %v1377, %v1376
  %v1387 = vsel %vm743, %v1348, 0
  %1389 = vmatprep.subr.bf16.mxu0 0
  %1390 = vmatpush1.bf16.msra.mxu0 %v1378
  %1391 = vmatprep.subr.bf16.mxu0 0
  %1392 = vmatpush1.bf16.msra.mxu0 %v1379
  %1393 = vmatprep.subr.bf16.mxu0 0
  %1394 = vmatpush1.bf16.msra.mxu0 %v1380
  %1395 = vmatprep.subr.bf16.mxu0 0
  %1396 = vmatpush1.bf16.msra.mxu0 %v1381
  %1397 = vmatprep.subr.bf16.mxu0 0
  %1398 = vmatpush1.bf16.msra.mxu0 0
  %1399 = vmatprep.subr.bf16.mxu0 0
  %1400 = vmatpush1.bf16.msra.mxu0 0
  %1401 = vmatprep.subr.bf16.mxu0 0
  %1402 = vmatpush1.bf16.msra.mxu0 0
  %1403 = vmatprep.subr.bf16.mxu0 0
  %1404 = vmatpush1.bf16.msra.mxu0 0
  %1405 = vmatprep.subr.bf16.mxu0 0
  %1406 = vmatpush1.bf16.msra.mxu0 0
  %1407 = vmatprep.subr.bf16.mxu0 0
  %1408 = vmatpush1.bf16.msra.mxu0 0
  %1409 = vmatprep.subr.bf16.mxu0 0
  %1410 = vmatpush1.bf16.msra.mxu0 0
  %1411 = vmatprep.subr.bf16.mxu0 0
  %1412 = vmatpush1.bf16.msra.mxu0 0
  %1413 = vmatprep.subr.bf16.mxu0 0
  %1414 = vmatpush1.bf16.msra.mxu0 0
  %1415 = vmatprep.subr.bf16.mxu0 0
  %1416 = vmatpush1.bf16.msra.mxu0 0
  %1417 = vmatprep.subr.bf16.mxu0 0
  %1418 = vmatpush1.bf16.msra.mxu0 0
  %1419 = vmatprep.subr.bf16.mxu0 0
  %1420 = vmatpush1.bf16.msra.mxu0 0
  %1421 = vmatprep.mubr.bf16.mxu0 0
  %1422 = vmatmul.mubr.bf16.gmra.mrb[0].mxu0 %v1387
  %v1423 = vpop.f32.mrb[0].mxu0
  %v1424 = vadd.f32 %v1361, %v1423
  %v1425 = vpop.f32.mrb[0].mxu0
  %v1426 = vpop.f32.mrb[0].mxu0
  %v1427 = vadd.f32 %v1361, %v1426
  %v1428 = vpop.f32.mrb[0].mxu0
  %1429 = vdwg.mxu0
  %v1430 = vadd.f32 %v1424, %v1262
  %v1431 = vadd.f32 %v1427, %v1263
  %v1432 = vld [vmem:[%s6 + $0x10] sm:$0x1]
  %v1433 = vld [vmem:[%s6 + $0x11] sm:$0x1]
  %v1434 = vsel %vm144, %v1430, 0.0
  %1435 = vadd.xlane.f32.xlu0 %v1434
  %v1436 = vpop.xlane.xlu0 %1435
  %v1437 = vsel %vm144, %v1431, 0.0
  %1438 = vadd.xlane.f32.xlu0 %v1437
  %v1439 = vpop.xlane.xlu0 %1438
  %v1440 = vmul.f32 %v1436, %v151
  %v1441 = vmul.f32 %v1439, %v151
  %v1442 = vsub.f32 %v1430, %v1440
  %v1443 = vsub.f32 %v1431, %v1441
  %v1444 = vmul.f32 %v1442, %v1442
  %v1445 = vmul.f32 %v1443, %v1443
  %v1446 = vsel %vm144, %v1444, 0.0
  %1447 = vadd.xlane.f32.xlu0 %v1446
  %v1448 = vpop.xlane.xlu0 %1447
  %v1449 = vsel %vm144, %v1445, 0.0
  %1450 = vadd.xlane.f32.xlu0 %v1449
  %v1451 = vpop.xlane.xlu0 %1450
  %v1452 = vmul.f32 %v1448, %v151
  %v1453 = vmul.f32 %v1451, %v151
  %v1454 = vadd.f32 %v1452, 1e-12
  %v1455 = vadd.f32 %v1453, 1e-12
  %v1456 = vrsqrt.pop %v1454
  %v1457 = vrsqrt.pop %v1455
  %v1458 = vmul.f32 %v1442, %v1456
  %v1459 = vmul.f32 %v1443, %v1457
  %v1460 = vlaneseq
  %v1461 = vshrl.u32 %v1460, 7
  %v1462 = vsub.s32 0, %v1461
  %v1463 = vrot.slane %v1432, %v1462
  %v1464 = vmul.f32 %v1458, %v1463
  %v1465 = vmul.f32 %v1459, %v1463
  %v1466 = vlaneseq
  %v1467 = vshrl.u32 %v1466, 7
  %v1468 = vsub.s32 0, %v1467
  %v1469 = vrot.slane %v1433, %v1468
  %v1470 = vadd.f32 %v1464, %v1469
  %v1471 = vadd.f32 %v1465, %v1469
  %v1473 = vrot.slane %v1471, 7
  %vm1475 = vcmask 1040384
  %v1476 = vsel %vm1475, %v1470, %v1473
  %v1477 = vpack.c.bf16 %v1476, %v1476
  %v1478 = vld [vmem:[%s3 + $0xa0] sm:$0xf]
  %v1479 = vld [vmem:[%s3 + $0xa4] sm:$0xf]
  %v1480 = vld [vmem:[%s3 + $0xa8] sm:$0xf]
  %v1481 = vld [vmem:[%s3 + $0xac] sm:$0xf]
  %v1482 = vld [vmem:[%s6 + $0x12] sm:$0x1]
  %v1483 = vlaneseq
  %v1484 = vshrl.u32 %v1483, 7
  %v1485 = vsub.s32 0, %v1484
  %v1486 = vrot.slane %v1482, %v1485
  %v1491 = vunpack.c.l.b16 %v1478
  %v1492 = vunpack.c.l.b16 %v1479
  %v1493 = vunpack.c.l.b16 %v1480
  %v1494 = vunpack.c.l.b16 %v1481
  %v1495 = vpack.c.b16 %v1492, %v1491
  %v1496 = vpack.c.b16 %v1494, %v1493
  %v1500 = vsel %vm144, %v1477, 0
  %1502 = vmatprep.subr.bf16.mxu0 0
  %1503 = vmatpush1.bf16.msra.mxu0 %v1495
  %1504 = vmatprep.subr.bf16.mxu0 0
  %1505 = vmatpush1.bf16.msra.mxu0 %v1496
  %1506 = vmatprep.subr.bf16.mxu0 0
  %1507 = vmatpush1.bf16.msra.mxu0 0
  %1508 = vmatprep.subr.bf16.mxu0 0
  %1509 = vmatpush1.bf16.msra.mxu0 0
  %1510 = vmatprep.subr.bf16.mxu0 0
  %1511 = vmatpush1.bf16.msra.mxu0 0
  %1512 = vmatprep.subr.bf16.mxu0 0
  %1513 = vmatpush1.bf16.msra.mxu0 0
  %1514 = vmatprep.subr.bf16.mxu0 0
  %1515 = vmatpush1.bf16.msra.mxu0 0
  %1516 = vmatprep.subr.bf16.mxu0 0
  %1517 = vmatpush1.bf16.msra.mxu0 0
  %1518 = vmatprep.subr.bf16.mxu0 0
  %1519 = vmatpush1.bf16.msra.mxu0 0
  %1520 = vmatprep.subr.bf16.mxu0 0
  %1521 = vmatpush1.bf16.msra.mxu0 0
  %1522 = vmatprep.subr.bf16.mxu0 0
  %1523 = vmatpush1.bf16.msra.mxu0 0
  %1524 = vmatprep.subr.bf16.mxu0 0
  %1525 = vmatpush1.bf16.msra.mxu0 0
  %1526 = vmatprep.subr.bf16.mxu0 0
  %1527 = vmatpush1.bf16.msra.mxu0 0
  %1528 = vmatprep.subr.bf16.mxu0 0
  %1529 = vmatpush1.bf16.msra.mxu0 0
  %1530 = vmatprep.subr.bf16.mxu0 0
  %1531 = vmatpush1.bf16.msra.mxu0 0
  %1532 = vmatprep.subr.bf16.mxu0 0
  %1533 = vmatpush1.bf16.msra.mxu0 0
  %1534 = vmatprep.mubr.bf16.mxu0 0
  %1535 = vmatmul.mubr.bf16.gmra.mrb[0].mxu0 %v1500
  %v1536 = vpop.f32.mrb[0].mxu0
  %v1537 = vadd.f32 %v1486, %v1536
  %v1538 = vpop.f32.mrb[0].mxu0
  %v1539 = vpop.f32.mrb[0].mxu0
  %v1540 = vpop.f32.mrb[0].mxu0
  %1541 = vdwg.mxu0
  %v1542 = vtanh.pop %v1537
  %v1543 = vld [vmem:[%s6 + $0x13] sm:$0x1]
  %v1544 = vlaneseq
  %v1545 = vshrl.u32 %v1544, 7
  %v1546 = vsub.s32 0, %v1545
  %v1547 = vrot.slane %v1543, %v1546
  %v1548 = vmul.f32 %v1542, %v1547
  %vm1549 = vcmask 254976
  %v1550 = vsel %vm1549, %v1548, 0.0
  %1551 = vadd.xlane.f32.xlu0 %v1550
  %v1552 = vpop.xlane.xlu0 %1551
  %v1553 = vld [vmem:[%s6 + $0x14] sm:$0x1]
  %v1554 = vlaneseq
  %v1555 = vshrl.u32 %v1554, 7
  %v1556 = vsub.s32 0, %v1555
  %v1557 = vrot.slane %v1553, %v1556
  %v1558 = vadd.f32 %v1552, %v1557
  %v1559 = vxor.u32 %v1558, 2147483648
  %v1560 = vmul.f32 %v1559, 1.442695
  %v1561 = vpow.pop %v1560
  %v1562 = vadd.f32 %v1561, 1.0
  %v1563 = vrcp.pop %v1562
  %v1564 = vmul.f32 1.0, %v1563
  %vm1565 = vcmask 1024
  %1566 = vst.msk [vmem:[%s7] sm:$0x3] %vm1565, %v1564
  // Predicated region
  $region30: #{neural_network_forward.1} parent=0 // pred_check
    _
  $region31: #{neural_network_forward.1} parent=0 // pred_check_branch
    %1568 = sbr.rel (0) target = $region33
  $region32: #{neural_network_forward.1} parent=0 // pred_region
    _
  $region33: #{neural_network_forward.1} parent=0 // pred_fallthru
    _
  // Predicated region
  $region34: #{neural_network_forward.1} parent=0 // pred_check
    _
  $region35: #{neural_network_forward.1} parent=0 // pred_check_branch
    %1570 = sbr.rel (0) target = $region37
  $region36: #{neural_network_forward.1} parent=0 // pred_region
    _
  $region37: #{neural_network_forward.1} parent=0 // pred_fallthru
    _

</llo_original>
